<compile_context>
chip_gen: v7x
topology: tpu7x:2x2x1
jax: 0.10.0
libtpu: 0.0.40
codegen_flags: <defaults>
</compile_context>

<pallas_src>
import functools

import jax
import jax.numpy as jnp
from jax import lax
from jax.experimental import pallas as pl
from jax.experimental.pallas import tpu as pltpu

BN_EPS = 1e-5
POOL = 3  # every MaxPool2d in the module is kernel=(1,3), stride=(1,3)


def _fold_bn(w, conv_b, gamma, beta, rmean, rvar):
    """Fold conv bias + eval-mode BatchNorm into (im2col weight, scale, bias)."""
    KH, KW, Cin, Cout = w.shape
    scale = gamma / jnp.sqrt(rvar + BN_EPS)
    bias = beta + (conv_b - rmean) * scale
    wr = w.reshape(KH * KW * Cin, Cout).astype(jnp.float32)   # (kh, kw, cin) -> K
    return (wr,
            scale.reshape(1, Cout).astype(jnp.float32),
            bias.reshape(1, Cout).astype(jnp.float32))


def _cnn_block_kernel(a1_ref, w2_ref, s2_ref, b2_ref, w3_ref, s3_ref, b3_ref,
                      o_ref, *, S, n2, n3, hidden):
    """conv2 + conv3 (+BN+ReLU+pool each) + global width-mean, one batch item.

    a1_ref : (S, n1*32)  conv1 activation, width-major / channel-minor on lanes.
    w*_ref : im2col weights (K, Cout) with K ordered (kh, kw, cin).
    s*/b*  : (1, Cout) folded BatchNorm scale / bias.
    o_ref  : (S, hidden) output block.
    """
    C1, C2 = 32, 64

    # ---- conv2: Conv2d(32, 64, (1,12)) + BN + ReLU + MaxPool((1,3),(1,3)) --------
    a1 = a1_ref[...]                                       # (S, n1*32), lane-dense
    wc2 = n2 * POOL                                        # conv cols actually used
    # im2col: the patch row-block of output column w is the contiguous lane slice
    # a1[:, w*32 : w*32 + 12*32] (12 taps x 32 channels); the whole-layer patch is
    # those slices stacked on the sublane axis -> a single MXU matmul.
    patch2 = jnp.concatenate(
        [a1[:, w * C1: w * C1 + 12 * C1] for w in range(wc2)], axis=0)  # (wc2*S, 384)
    acc2 = jnp.dot(patch2, w2_ref[...], preferred_element_type=jnp.float32)
    y2 = jnp.maximum(acc2 * s2_ref[...] + b2_ref[...], 0.0)      # BN(eval) + ReLU
    y2 = y2.reshape(n2, POOL, S, C2).max(axis=1)                 # pool -> (n2, S, 64)

    # ---- conv3: Conv2d(64, hidden, (3,6), pad=(1,0)) + BN + ReLU + MaxPool((1,3)) -
    zrow = jnp.zeros((n2, 1, C2), jnp.float32)                   # seq (H) padding rows
    a2 = jnp.concatenate([zrow, y2, zrow], axis=1)               # (n2, S+2, 64)
    wc3 = n3 * POOL
    cols = [a2[kw:kw + wc3, kh:kh + S, :]                        # each (wc3, S, 64)
            for kh in range(3) for kw in range(6)]
    patch3 = jnp.concatenate(cols, axis=-1).reshape(wc3 * S, 3 * 6 * C2)
    acc3 = jnp.dot(patch3, w3_ref[...], preferred_element_type=jnp.float32)
    y3 = jnp.maximum(acc3 * s3_ref[...] + b3_ref[...], 0.0)
    y3 = y3.reshape(n3, POOL, S, hidden).max(axis=1)             # (n3, S, hidden)

    # AdaptiveAvgPool2d((None, 1)) == mean over the pooled width.
    o_ref[...] = y3.mean(axis=0).astype(o_ref.dtype)


def _conv1_stage(x, w1, s1, b1, n1):
    """conv1 + BN + ReLU + MaxPool((1,3)) in plain JAX (per perf review: ~0.9 MFLOP,
    and Cin=1 / K=15 is a poor MXU fit whose im2col is pure lane relayout in-kernel).
    Returns a lane-dense (B, S, n1*32) activation for the Pallas kernel."""
    B, S, F = x.shape
    xp = jnp.pad(x.astype(jnp.float32), ((0, 0), (2, 2), (1, 1)))   # (B, S+4, F+2)
    taps = [xp[:, kh:kh + S, kw:kw + n1 * POOL]                     # (B, S, n1*3)
            for kh in range(5) for kw in range(3)]
    patch = jnp.stack(taps, axis=-1)                                # (B, S, n1*3, 15)
    y = jnp.einsum('bswk,kc->bswc', patch, w1)                      # (B, S, n1*3, 32)
    y = jnp.maximum(y * s1 + b1, 0.0)                               # BN(eval) + ReLU
    y = y.reshape(B, S, n1, POOL, 32).max(axis=3)                   # pool width / 3
    return y.reshape(B, S, n1 * 32)


def cnn_block_forward(x, params):
    """x: (B, seq_len, freq_dim) -> (B, seq_len, hidden_dim).  Inference mode."""
    B, S, F = x.shape
    assert S % 8 == 0, "seq_len must be a multiple of the 8-sublane tile"

    # Layer geometry (PyTorch floor-mode pools).
    n1 = F // POOL                      # conv1 keeps width F (KW=3, pad=1), then pool
    n2 = (n1 - 12 + 1) // POOL
    n3 = (n2 - 6 + 1) // POOL
    assert n3 >= 1, "freq_dim too small for the three conv/pool stages"

    w1, s1, b1 = _fold_bn(*params[0])
    w2, s2, b2 = _fold_bn(*params[1])
    w3, s3, b3 = _fold_bn(*params[2])
    hidden = w3.shape[-1]

    a1 = _conv1_stage(x, w1, s1, b1, n1)        # (B, S, n1*32), lane-dense

    kernel = functools.partial(_cnn_block_kernel, S=S, n2=n2, n3=n3, hidden=hidden)

    def full(a):  # whole-array block, resident across the batch grid
        return pl.BlockSpec(a.shape, lambda b: (0,) * a.ndim)

    return pl.pallas_call(
        kernel,
        out_shape=jax.ShapeDtypeStruct((B, S, hidden), jnp.float32),
        grid=(B,),
        in_specs=[
            pl.BlockSpec((None, S, n1 * 32), lambda b: (b, 0, 0)),
            full(w2), full(s2), full(b2),
            full(w3), full(s3), full(b3),
        ],
        out_specs=pl.BlockSpec((None, S, hidden), lambda b: (b, 0, 0)),
        compiler_params=pltpu.CompilerParams(
            dimension_semantics=("parallel",)),
    )(a1, w2, s2, b2, w3, s3, b3)


def init_layer(key, KH, KW, Cin, Cout):
    k1, k2, k3, k4, k5, k6 = jax.random.split(key, 6)
    fan_in = KH * KW * Cin
    w = jax.random.normal(k1, (KH, KW, Cin, Cout), jnp.float32) / jnp.sqrt(fan_in)
    b = jax.random.normal(k2, (Cout,), jnp.float32) * 0.01
    gamma = jax.random.uniform(k3, (Cout,), jnp.float32, 0.5, 1.5)
    beta = jax.random.normal(k4, (Cout,), jnp.float32) * 0.1
    rmean = jax.random.normal(k5, (Cout,), jnp.float32) * 0.1
    rvar = jax.random.uniform(k6, (Cout,), jnp.float32, 0.5, 1.5)
    return (w, b, gamma, beta, rmean, rvar)


def ref_forward(x, params):
    """Pure-JAX reference (NHWC, H=seq, W=freq) mirroring the PyTorch module."""
    h = x[:, :, :, None].astype(jnp.float32)
    pads = [(2, 1), (0, 0), (1, 0)]
    for (w, b, gamma, beta, rmean, rvar), (ph, pw) in zip(params, pads):
        h = lax.conv_general_dilated(
            h, w, window_strides=(1, 1), padding=((ph, ph), (pw, pw)),
            dimension_numbers=("NHWC", "HWIO", "NHWC"))
        h = h + b
        h = (h - rmean) / jnp.sqrt(rvar + BN_EPS) * gamma + beta
        h = jnp.maximum(h, 0.0)
        n = h.shape[2] // 3
        h = h[:, :, : n * 3].reshape(
            h.shape[0], h.shape[1], n, 3, h.shape[3]).max(axis=3)
    return h.mean(axis=2)  # (B, seq, hidden)


if __name__ == "__main__":
    key = jax.random.PRNGKey(0)
    k_x, k1, k2, k3 = jax.random.split(key, 4)

    B, S, F = 2, 8, 108          # batch, seq_len, freq_dim (wide enough for 3 convs)
    hidden_dim = 64

    x = jax.random.normal(k_x, (B, S, F), jnp.float32)
    params = [
        init_layer(k1, 5, 3, 1, 32),           # conv1: Conv2d(1,32,(5,3),pad(2,1))
        init_layer(k2, 1, 12, 32, 64),         # conv2: Conv2d(32,64,(1,12))
        init_layer(k3, 3, 6, 64, hidden_dim),  # conv3: Conv2d(64,hidden,(3,6),pad(1,0))
    ]

    out = jax.jit(cnn_block_forward)(x, params)
    out = jax.block_until_ready(out)
    assert out.shape == (B, S, hidden_dim), out.shape

    ref = ref_forward(x, params)
    if not jnp.allclose(out, ref, atol=2e-3, rtol=2e-3):
        raise AssertionError(
            f"mismatch vs reference: max abs err {float(jnp.max(jnp.abs(out - ref)))}")

    print("KERNEL_OK")
</pallas_src>

<mosaic_0001>
module attributes {stable_mosaic.version = 11 : i64} {
  func.func @_cnn_block_kernel(%arg0: i32, %arg1: memref<1x8x1152xf32, #tpu.memory_space<vmem>>, %arg2: memref<384x64xf32, #tpu.memory_space<vmem>>, %arg3: memref<1x64xf32, #tpu.memory_space<vmem>>, %arg4: memref<1x64xf32, #tpu.memory_space<vmem>>, %arg5: memref<1152x64xf32, #tpu.memory_space<vmem>>, %arg6: memref<1x64xf32, #tpu.memory_space<vmem>>, %arg7: memref<1x64xf32, #tpu.memory_space<vmem>>, %arg8: memref<1x8x64xf32, #tpu.memory_space<vmem>>) attributes {dimension_semantics = [#tpu.dimension_semantics<parallel>], iteration_bounds = array<i64: 2>, scalar_prefetch = 0 : i64, scratch_operands = 0 : i64, tpu.core_type = #tpu.core_type<tc>, window_params = [{transform_indices = @transform_0, window_bounds = array<i64: 1, 8, 1152>}, {pipeline_mode = #tpu.pipeline_mode<synchronous>, transform_indices = @transform_1, window_bounds = array<i64: 384, 64>}, {pipeline_mode = #tpu.pipeline_mode<synchronous>, transform_indices = @transform_2, window_bounds = array<i64: 1, 64>}, {pipeline_mode = #tpu.pipeline_mode<synchronous>, transform_indices = @transform_3, window_bounds = array<i64: 1, 64>}, {pipeline_mode = #tpu.pipeline_mode<synchronous>, transform_indices = @transform_4, window_bounds = array<i64: 1152, 64>}, {pipeline_mode = #tpu.pipeline_mode<synchronous>, transform_indices = @transform_5, window_bounds = array<i64: 1, 64>}, {pipeline_mode = #tpu.pipeline_mode<synchronous>, transform_indices = @transform_6, window_bounds = array<i64: 1, 64>}, {transform_indices = @transform_7, window_bounds = array<i64: 1, 8, 64>}]} {
    %c0 = arith.constant 0 : index
    %c0_0 = arith.constant 0 : index
    %c0_1 = arith.constant 0 : index
    %0 = vector.load %arg1[%c0, %c0_0, %c0_1] : memref<1x8x1152xf32, #tpu.memory_space<vmem>>, vector<1x8x1152xf32>
    %1 = vector.shape_cast %0 : vector<1x8x1152xf32> to vector<8x1152xf32>
    %2 = vector.extract_strided_slice %1 {offsets = [0, 0], sizes = [8, 384], strides = [1, 1]} : vector<8x1152xf32> to vector<8x384xf32>
    %3 = vector.extract_strided_slice %1 {offsets = [0, 32], sizes = [8, 384], strides = [1, 1]} : vector<8x1152xf32> to vector<8x384xf32>
    %4 = vector.extract_strided_slice %1 {offsets = [0, 64], sizes = [8, 384], strides = [1, 1]} : vector<8x1152xf32> to vector<8x384xf32>
    %5 = vector.extract_strided_slice %1 {offsets = [0, 96], sizes = [8, 384], strides = [1, 1]} : vector<8x1152xf32> to vector<8x384xf32>
    %6 = vector.extract_strided_slice %1 {offsets = [0, 128], sizes = [8, 384], strides = [1, 1]} : vector<8x1152xf32> to vector<8x384xf32>
    %7 = vector.extract_strided_slice %1 {offsets = [0, 160], sizes = [8, 384], strides = [1, 1]} : vector<8x1152xf32> to vector<8x384xf32>
    %8 = vector.extract_strided_slice %1 {offsets = [0, 192], sizes = [8, 384], strides = [1, 1]} : vector<8x1152xf32> to vector<8x384xf32>
    %9 = vector.extract_strided_slice %1 {offsets = [0, 224], sizes = [8, 384], strides = [1, 1]} : vector<8x1152xf32> to vector<8x384xf32>
    %10 = vector.extract_strided_slice %1 {offsets = [0, 256], sizes = [8, 384], strides = [1, 1]} : vector<8x1152xf32> to vector<8x384xf32>
    %11 = vector.extract_strided_slice %1 {offsets = [0, 288], sizes = [8, 384], strides = [1, 1]} : vector<8x1152xf32> to vector<8x384xf32>
    %12 = vector.extract_strided_slice %1 {offsets = [0, 320], sizes = [8, 384], strides = [1, 1]} : vector<8x1152xf32> to vector<8x384xf32>
    %13 = vector.extract_strided_slice %1 {offsets = [0, 352], sizes = [8, 384], strides = [1, 1]} : vector<8x1152xf32> to vector<8x384xf32>
    %14 = vector.extract_strided_slice %1 {offsets = [0, 384], sizes = [8, 384], strides = [1, 1]} : vector<8x1152xf32> to vector<8x384xf32>
    %15 = vector.extract_strided_slice %1 {offsets = [0, 416], sizes = [8, 384], strides = [1, 1]} : vector<8x1152xf32> to vector<8x384xf32>
    %16 = vector.extract_strided_slice %1 {offsets = [0, 448], sizes = [8, 384], strides = [1, 1]} : vector<8x1152xf32> to vector<8x384xf32>
    %17 = vector.extract_strided_slice %1 {offsets = [0, 480], sizes = [8, 384], strides = [1, 1]} : vector<8x1152xf32> to vector<8x384xf32>
    %18 = vector.extract_strided_slice %1 {offsets = [0, 512], sizes = [8, 384], strides = [1, 1]} : vector<8x1152xf32> to vector<8x384xf32>
    %19 = vector.extract_strided_slice %1 {offsets = [0, 544], sizes = [8, 384], strides = [1, 1]} : vector<8x1152xf32> to vector<8x384xf32>
    %20 = vector.extract_strided_slice %1 {offsets = [0, 576], sizes = [8, 384], strides = [1, 1]} : vector<8x1152xf32> to vector<8x384xf32>
    %21 = vector.extract_strided_slice %1 {offsets = [0, 608], sizes = [8, 384], strides = [1, 1]} : vector<8x1152xf32> to vector<8x384xf32>
    %22 = vector.extract_strided_slice %1 {offsets = [0, 640], sizes = [8, 384], strides = [1, 1]} : vector<8x1152xf32> to vector<8x384xf32>
    %23 = vector.extract_strided_slice %1 {offsets = [0, 672], sizes = [8, 384], strides = [1, 1]} : vector<8x1152xf32> to vector<8x384xf32>
    %24 = vector.extract_strided_slice %1 {offsets = [0, 704], sizes = [8, 384], strides = [1, 1]} : vector<8x1152xf32> to vector<8x384xf32>
    %25 = vector.extract_strided_slice %1 {offsets = [0, 736], sizes = [8, 384], strides = [1, 1]} : vector<8x1152xf32> to vector<8x384xf32>
    %26 = tpu.concatenate %2, %3, %4, %5, %6, %7, %8, %9, %10, %11, %12, %13, %14, %15, %16, %17 in 0 : vector<8x384xf32>, vector<8x384xf32>, vector<8x384xf32>, vector<8x384xf32>, vector<8x384xf32>, vector<8x384xf32>, vector<8x384xf32>, vector<8x384xf32>, vector<8x384xf32>, vector<8x384xf32>, vector<8x384xf32>, vector<8x384xf32>, vector<8x384xf32>, vector<8x384xf32>, vector<8x384xf32>, vector<8x384xf32> -> vector<128x384xf32>
    %27 = tpu.concatenate %18, %19, %20, %21, %22, %23, %24, %25 in 0 : vector<8x384xf32>, vector<8x384xf32>, vector<8x384xf32>, vector<8x384xf32>, vector<8x384xf32>, vector<8x384xf32>, vector<8x384xf32>, vector<8x384xf32> -> vector<64x384xf32>
    %28 = tpu.concatenate %26, %27 in 0 : vector<128x384xf32>, vector<64x384xf32> -> vector<192x384xf32>
    %c0_2 = arith.constant 0 : index
    %c0_3 = arith.constant 0 : index
    %29 = vector.load %arg2[%c0_2, %c0_3] : memref<384x64xf32, #tpu.memory_space<vmem>>, vector<384x64xf32>
    %cst = arith.constant dense<0.000000e+00> : vector<192x64xf32>
    %30 = tpu.matmul %28, %29, %cst {dimension_numbers = #tpu.dot_dimension_numbers<[1], [0], [0], [1], [0, 0, 1, 1], [], []>} : vector<192x384xf32>, vector<384x64xf32>, vector<192x64xf32> -> vector<192x64xf32>
    %c0_4 = arith.constant 0 : index
    %c0_5 = arith.constant 0 : index
    %31 = vector.load %arg3[%c0_4, %c0_5] : memref<1x64xf32, #tpu.memory_space<vmem>>, vector<1x64xf32>
    %32 = vector.broadcast %31 : vector<1x64xf32> to vector<192x64xf32>
    %33 = arith.mulf %30, %32 : vector<192x64xf32>
    %c0_6 = arith.constant 0 : index
    %c0_7 = arith.constant 0 : index
    %34 = vector.load %arg4[%c0_6, %c0_7] : memref<1x64xf32, #tpu.memory_space<vmem>>, vector<1x64xf32>
    %35 = vector.broadcast %34 : vector<1x64xf32> to vector<192x64xf32>
    %36 = arith.addf %33, %35 : vector<192x64xf32>
    %cst_8 = arith.constant 0.000000e+00 : f32
    %37 = vector.broadcast %cst_8 : f32 to vector<192x64xf32>
    %38 = arith.maximumf %36, %37 : vector<192x64xf32>
    %39 = vector.shape_cast %38 : vector<192x64xf32> to vector<8x3x8x64xf32>
    %cst_9 = arith.constant dense<0xFF800000> : vector<8x8x64xf32>
    %40 = vector.multi_reduction <maximumf>, %39, %cst_9 [1] : vector<8x3x8x64xf32> to vector<8x8x64xf32>
    %cst_10 = arith.constant 0.000000e+00 : f32
    %41 = vector.broadcast %cst_10 : f32 to vector<8x1x64xf32>
    %42 = tpu.concatenate %41, %40, %41 in 1 : vector<8x1x64xf32>, vector<8x8x64xf32>, vector<8x1x64xf32> -> vector<8x10x64xf32>
    %43 = vector.extract_strided_slice %42 {offsets = [0, 0, 0], sizes = [3, 8, 64], strides = [1, 1, 1]} : vector<8x10x64xf32> to vector<3x8x64xf32>
    %44 = vector.extract_strided_slice %42 {offsets = [1, 0, 0], sizes = [3, 8, 64], strides = [1, 1, 1]} : vector<8x10x64xf32> to vector<3x8x64xf32>
    %45 = vector.extract_strided_slice %42 {offsets = [2, 0, 0], sizes = [3, 8, 64], strides = [1, 1, 1]} : vector<8x10x64xf32> to vector<3x8x64xf32>
    %46 = vector.extract_strided_slice %42 {offsets = [3, 0, 0], sizes = [3, 8, 64], strides = [1, 1, 1]} : vector<8x10x64xf32> to vector<3x8x64xf32>
    %47 = vector.extract_strided_slice %42 {offsets = [4, 0, 0], sizes = [3, 8, 64], strides = [1, 1, 1]} : vector<8x10x64xf32> to vector<3x8x64xf32>
    %48 = vector.extract_strided_slice %42 {offsets = [5, 0, 0], sizes = [3, 8, 64], strides = [1, 1, 1]} : vector<8x10x64xf32> to vector<3x8x64xf32>
    %49 = vector.extract_strided_slice %42 {offsets = [0, 1, 0], sizes = [3, 8, 64], strides = [1, 1, 1]} : vector<8x10x64xf32> to vector<3x8x64xf32>
    %50 = vector.extract_strided_slice %42 {offsets = [1, 1, 0], sizes = [3, 8, 64], strides = [1, 1, 1]} : vector<8x10x64xf32> to vector<3x8x64xf32>
    %51 = vector.extract_strided_slice %42 {offsets = [2, 1, 0], sizes = [3, 8, 64], strides = [1, 1, 1]} : vector<8x10x64xf32> to vector<3x8x64xf32>
    %52 = vector.extract_strided_slice %42 {offsets = [3, 1, 0], sizes = [3, 8, 64], strides = [1, 1, 1]} : vector<8x10x64xf32> to vector<3x8x64xf32>
    %53 = vector.extract_strided_slice %42 {offsets = [4, 1, 0], sizes = [3, 8, 64], strides = [1, 1, 1]} : vector<8x10x64xf32> to vector<3x8x64xf32>
    %54 = vector.extract_strided_slice %42 {offsets = [5, 1, 0], sizes = [3, 8, 64], strides = [1, 1, 1]} : vector<8x10x64xf32> to vector<3x8x64xf32>
    %55 = vector.extract_strided_slice %42 {offsets = [0, 2, 0], sizes = [3, 8, 64], strides = [1, 1, 1]} : vector<8x10x64xf32> to vector<3x8x64xf32>
    %56 = vector.extract_strided_slice %42 {offsets = [1, 2, 0], sizes = [3, 8, 64], strides = [1, 1, 1]} : vector<8x10x64xf32> to vector<3x8x64xf32>
    %57 = vector.extract_strided_slice %42 {offsets = [2, 2, 0], sizes = [3, 8, 64], strides = [1, 1, 1]} : vector<8x10x64xf32> to vector<3x8x64xf32>
    %58 = vector.extract_strided_slice %42 {offsets = [3, 2, 0], sizes = [3, 8, 64], strides = [1, 1, 1]} : vector<8x10x64xf32> to vector<3x8x64xf32>
    %59 = vector.extract_strided_slice %42 {offsets = [4, 2, 0], sizes = [3, 8, 64], strides = [1, 1, 1]} : vector<8x10x64xf32> to vector<3x8x64xf32>
    %60 = vector.extract_strided_slice %42 {offsets = [5, 2, 0], sizes = [3, 8, 64], strides = [1, 1, 1]} : vector<8x10x64xf32> to vector<3x8x64xf32>
    %61 = tpu.concatenate %43, %44, %45, %46, %47, %48, %49, %50, %51, %52, %53, %54, %55, %56, %57, %58 in 2 : vector<3x8x64xf32>, vector<3x8x64xf32>, vector<3x8x64xf32>, vector<3x8x64xf32>, vector<3x8x64xf32>, vector<3x8x64xf32>, vector<3x8x64xf32>, vector<3x8x64xf32>, vector<3x8x64xf32>, vector<3x8x64xf32>, vector<3x8x64xf32>, vector<3x8x64xf32>, vector<3x8x64xf32>, vector<3x8x64xf32>, vector<3x8x64xf32>, vector<3x8x64xf32> -> vector<3x8x1024xf32>
    %62 = tpu.concatenate %59, %60 in 2 : vector<3x8x64xf32>, vector<3x8x64xf32> -> vector<3x8x128xf32>
    %63 = tpu.concatenate %61, %62 in 2 : vector<3x8x1024xf32>, vector<3x8x128xf32> -> vector<3x8x1152xf32>
    %64 = vector.shape_cast %63 : vector<3x8x1152xf32> to vector<24x1152xf32>
    %c0_11 = arith.constant 0 : index
    %c0_12 = arith.constant 0 : index
    %65 = vector.load %arg5[%c0_11, %c0_12] : memref<1152x64xf32, #tpu.memory_space<vmem>>, vector<1152x64xf32>
    %cst_13 = arith.constant dense<0.000000e+00> : vector<24x64xf32>
    %66 = tpu.matmul %64, %65, %cst_13 {dimension_numbers = #tpu.dot_dimension_numbers<[1], [0], [0], [1], [0, 0, 1, 1], [], []>} : vector<24x1152xf32>, vector<1152x64xf32>, vector<24x64xf32> -> vector<24x64xf32>
    %c0_14 = arith.constant 0 : index
    %c0_15 = arith.constant 0 : index
    %67 = vector.load %arg6[%c0_14, %c0_15] : memref<1x64xf32, #tpu.memory_space<vmem>>, vector<1x64xf32>
    %68 = vector.broadcast %67 : vector<1x64xf32> to vector<24x64xf32>
    %69 = arith.mulf %66, %68 : vector<24x64xf32>
    %c0_16 = arith.constant 0 : index
    %c0_17 = arith.constant 0 : index
    %70 = vector.load %arg7[%c0_16, %c0_17] : memref<1x64xf32, #tpu.memory_space<vmem>>, vector<1x64xf32>
    %71 = vector.broadcast %70 : vector<1x64xf32> to vector<24x64xf32>
    %72 = arith.addf %69, %71 : vector<24x64xf32>
    %cst_18 = arith.constant 0.000000e+00 : f32
    %73 = vector.broadcast %cst_18 : f32 to vector<24x64xf32>
    %74 = arith.maximumf %72, %73 : vector<24x64xf32>
    %75 = vector.shape_cast %74 : vector<24x64xf32> to vector<1x3x8x64xf32>
    %cst_19 = arith.constant dense<0xFF800000> : vector<1x8x64xf32>
    %76 = vector.multi_reduction <maximumf>, %75, %cst_19 [1] : vector<1x3x8x64xf32> to vector<1x8x64xf32>
    %cst_20 = arith.constant dense<0.000000e+00> : vector<8x64xf32>
    %77 = vector.multi_reduction <add>, %76, %cst_20 [0] : vector<1x8x64xf32> to vector<8x64xf32>
    %cst_21 = arith.constant 1.000000e+00 : f32
    %78 = vector.broadcast %cst_21 : f32 to vector<8x64xf32>
    %79 = arith.divf %77, %78 : vector<8x64xf32>
    %c0_22 = arith.constant 0 : index
    %c0_23 = arith.constant 0 : index
    %c0_24 = arith.constant 0 : index
    %80 = vector.load %arg8[%c0_22, %c0_23, %c0_24] : memref<1x8x64xf32, #tpu.memory_space<vmem>>, vector<1x8x64xf32>
    %81 = vector.shape_cast %80 : vector<1x8x64xf32> to vector<8x64xf32>
    %82 = vector.shape_cast %79 : vector<8x64xf32> to vector<1x8x64xf32>
    tpu.vector_store %arg8[%c0_22, %c0_23, %c0_24], %82 {strides = array<i32>} : memref<1x8x64xf32, #tpu.memory_space<vmem>>, vector<1x8x64xf32>,
    return
  }
  func.func @transform_0(%arg0: i32) -> (i32, i32, i32) {
    %c0_i32 = arith.constant 0 : i32
    %c0_i32_0 = arith.constant 0 : i32
    %c0_i32_1 = arith.constant 0 : i32
    return %arg0, %c0_i32, %c0_i32_0 : i32, i32, i32
  }
  func.func @transform_1(%arg0: i32) -> (i32, i32) {
    %c0_i32 = arith.constant 0 : i32
    %c0_i32_0 = arith.constant 0 : i32
    %c0_i32_1 = arith.constant 0 : i32
    return %c0_i32, %c0_i32_0 : i32, i32
  }
  func.func @transform_2(%arg0: i32) -> (i32, i32) {
    %c0_i32 = arith.constant 0 : i32
    %c0_i32_0 = arith.constant 0 : i32
    %c0_i32_1 = arith.constant 0 : i32
    return %c0_i32, %c0_i32_0 : i32, i32
  }
  func.func @transform_3(%arg0: i32) -> (i32, i32) {
    %c0_i32 = arith.constant 0 : i32
    %c0_i32_0 = arith.constant 0 : i32
    %c0_i32_1 = arith.constant 0 : i32
    return %c0_i32, %c0_i32_0 : i32, i32
  }
  func.func @transform_4(%arg0: i32) -> (i32, i32) {
    %c0_i32 = arith.constant 0 : i32
    %c0_i32_0 = arith.constant 0 : i32
    %c0_i32_1 = arith.constant 0 : i32
    return %c0_i32, %c0_i32_0 : i32, i32
  }
  func.func @transform_5(%arg0: i32) -> (i32, i32) {
    %c0_i32 = arith.constant 0 : i32
    %c0_i32_0 = arith.constant 0 : i32
    %c0_i32_1 = arith.constant 0 : i32
    return %c0_i32, %c0_i32_0 : i32, i32
  }
  func.func @transform_6(%arg0: i32) -> (i32, i32) {
    %c0_i32 = arith.constant 0 : i32
    %c0_i32_0 = arith.constant 0 : i32
    %c0_i32_1 = arith.constant 0 : i32
    return %c0_i32, %c0_i32_0 : i32, i32
  }
  func.func @transform_7(%arg0: i32) -> (i32, i32, i32) {
    %c0_i32 = arith.constant 0 : i32
    %c0_i32_0 = arith.constant 0 : i32
    %c0_i32_1 = arith.constant 0 : i32
    return %arg0, %c0_i32, %c0_i32_0 : i32, i32, i32
  }
}

</mosaic_0001>

<llo_original>
// kernel: cnn_block_forward.1
$region0: #{cnn_block_forward.1}
  #allocation0 [shape = 'u32[]', space=smem, size = 0x4, offset = 0x4, fixed_abs, tag = 'smem constant byte address 0x4 - core index']
  #allocation1 [shape = 'u32[144,128]{1,0:T(1,128)}', space=vmem, size = 0x12000, scoped, tag = 'internal scratch']
  %s0 = inlined_call_operand.vmem [shape: f32[2,8,1152], index: 0, kind: input, shape index: {}]
  %s1 = inlined_call_operand.vmem [shape: f32[384,64], index: 1, kind: input, shape index: {}]
  %s2 = inlined_call_operand.vmem [shape: f32[1,64], index: 2, kind: input, shape index: {}]
  %s3 = inlined_call_operand.vmem [shape: f32[1,64], index: 3, kind: input, shape index: {}]
  %s4 = inlined_call_operand.vmem [shape: f32[1152,64], index: 4, kind: input, shape index: {}]
  %s5 = inlined_call_operand.vmem [shape: f32[1,64], index: 5, kind: input, shape index: {}]
  %s6 = inlined_call_operand.vmem [shape: f32[1,64], index: 6, kind: input, shape index: {}]
  %s7 = inlined_call_operand.hbm [shape: f32[2,8,64], index: 7, kind: output, shape index: {}]
  %s8 = sld [smem:[#allocation0]]
  $region61: #{cnn_block_forward.1} parent=0
    _
  %s10 = ssub.s32 1, %s8
  %s11 = scalar_select 0, %s10, %s8
  $region1: #{cnn_block_forward.1} parent=0
    #allocation2 [shape = 'u8[8192]{0}', space=vmem, size = 0x2000, scoped, tag = 'output window, operand 0']
    #allocation3 [shape = 's32[2]{0}', space=sflag, size = 0x8, scoped, tag = 'scoped memory for cnn_block_forward.1']
    %12 = vsyncpa [#allocation3], 0
    %s13 = scalar_lea.sflag [#allocation3], 1
    %14 = vsyncpa %s13, 0
    loop: start=0, step=1, limit=4
    $region2: #{cnn_block_forward.1} parent=1 // loop_pre_header
      _
    $region3: #{cnn_block_forward.1} parent=1 // loop_header
      %s16 = sphi 0, %s20
      %p17 = scmp.ge.s32.totalorder %s16, 4
      %s26 = sphi 0, %s28
      %s29 = sphi 0, %s26
      %s30 = sphi 0, %s29
      %s46 = sphi 0, %s30
      %s50 = sphi 0, %s50
      %s52 = sphi 0, %s50
      %s53 = sphi 0, %s52
      %s67 = sphi 0, %s53
      %s71 = sphi 0, %s71
      %s73 = sphi 0, %s71
      %s74 = sphi 0, %s73
      %s88 = sphi 0, %s74
      %s92 = sphi 0, %s92
      %s94 = sphi 0, %s92
      %s95 = sphi 0, %s94
      %s109 = sphi 0, %s95
      %s113 = sphi 0, %s113
      %s115 = sphi 0, %s113
      %s116 = sphi 0, %s115
      %s130 = sphi 0, %s116
      %s134 = sphi 0, %s134
      %s136 = sphi 0, %s134
      %s137 = sphi 0, %s136
      %s151 = sphi 0, %s137
      %s155 = sphi 0, %s155
      %s157 = sphi 0, %s155
      %s158 = sphi 0, %s157
      %s172 = sphi 0, %s158
      %s178 = sphi 0, %s180
      %s181 = sphi 0, %s178
      %s182 = sphi 0, %s181
      %s198 = sphi 0, %s182
    $region4: #{cnn_block_forward.1} parent=1 // loop_header_branch
      %19 = sbr.rel (%p17) target = $region8
    $region5: #{cnn_block_forward.1} parent=1 // loop_body
      %s21 = ssub.s32 %s16, 1
      %s22 = ssub.s32 %s16, 2
      %s23 = sadd.s32 %s16, 1
      %s24 = ssub.s32 %s16, %s23
      %p25 = scmp.eq.s32.totalorder %s24, 0
      %s27 = sadd.s32 %s26, 1
      %s28 = scalar_select %p25, %s26, %s27
      %p31 = pneg %p25
      %p32 = scmp.eq.s32.totalorder %s16, 1
      %p33 = por %p31, %p32
      %p34 = scmp.ne.s32.totalorder %s26, %s29
      %p35 = scmp.eq.s32.totalorder %s16, 0
      %p36 = por %p34, %p35
      %p37 = scmp.ne.s32.totalorder %s26, %s29
      %p38 = scmp.eq.s32.totalorder %s21, 1
      %p39 = por %p37, %p38
      %p40 = scmp.ne.s32.totalorder %s29, %s30
      %p41 = scmp.eq.s32.totalorder %s21, 0
      %p42 = por %p40, %p41
      %p43 = scmp.ne.s32.totalorder %s29, %s30
      %p44 = scmp.eq.s32.totalorder %s22, 1
      %p45 = por %p43, %p44
      %p47 = scmp.ne.s32.totalorder %s30, %s46
      %p48 = scmp.eq.s32.totalorder %s22, 0
      %p49 = por %p47, %p48
      %s51 = sadd.s32 %s50, 1
      %p54 = scmp.eq.s32.totalorder %s16, 1
      %p55 = scmp.ne.s32.totalorder %s50, %s52
      %p56 = scmp.eq.s32.totalorder %s16, 0
      %p57 = por %p55, %p56
      %p58 = scmp.ne.s32.totalorder %s50, %s52
      %p59 = scmp.eq.s32.totalorder %s21, 1
      %p60 = por %p58, %p59
      %p61 = scmp.ne.s32.totalorder %s52, %s53
      %p62 = scmp.eq.s32.totalorder %s21, 0
      %p63 = por %p61, %p62
      %p64 = scmp.ne.s32.totalorder %s52, %s53
      %p65 = scmp.eq.s32.totalorder %s22, 1
      %p66 = por %p64, %p65
      %p68 = scmp.ne.s32.totalorder %s53, %s67
      %p69 = scmp.eq.s32.totalorder %s22, 0
      %p70 = por %p68, %p69
      %s72 = sadd.s32 %s71, 1
      %p75 = scmp.eq.s32.totalorder %s16, 1
      %p76 = scmp.ne.s32.totalorder %s71, %s73
      %p77 = scmp.eq.s32.totalorder %s16, 0
      %p78 = por %p76, %p77
      %p79 = scmp.ne.s32.totalorder %s71, %s73
      %p80 = scmp.eq.s32.totalorder %s21, 1
      %p81 = por %p79, %p80
      %p82 = scmp.ne.s32.totalorder %s73, %s74
      %p83 = scmp.eq.s32.totalorder %s21, 0
      %p84 = por %p82, %p83
      %p85 = scmp.ne.s32.totalorder %s73, %s74
      %p86 = scmp.eq.s32.totalorder %s22, 1
      %p87 = por %p85, %p86
      %p89 = scmp.ne.s32.totalorder %s74, %s88
      %p90 = scmp.eq.s32.totalorder %s22, 0
      %p91 = por %p89, %p90
      %s93 = sadd.s32 %s92, 1
      %p96 = scmp.eq.s32.totalorder %s16, 1
      %p97 = scmp.ne.s32.totalorder %s92, %s94
      %p98 = scmp.eq.s32.totalorder %s16, 0
      %p99 = por %p97, %p98
      %p100 = scmp.ne.s32.totalorder %s92, %s94
      %p101 = scmp.eq.s32.totalorder %s21, 1
      %p102 = por %p100, %p101
      %p103 = scmp.ne.s32.totalorder %s94, %s95
      %p104 = scmp.eq.s32.totalorder %s21, 0
      %p105 = por %p103, %p104
      %p106 = scmp.ne.s32.totalorder %s94, %s95
      %p107 = scmp.eq.s32.totalorder %s22, 1
      %p108 = por %p106, %p107
      %p110 = scmp.ne.s32.totalorder %s95, %s109
      %p111 = scmp.eq.s32.totalorder %s22, 0
      %p112 = por %p110, %p111
      %s114 = sadd.s32 %s113, 1
      %p117 = scmp.eq.s32.totalorder %s16, 1
      %p118 = scmp.ne.s32.totalorder %s113, %s115
      %p119 = scmp.eq.s32.totalorder %s16, 0
      %p120 = por %p118, %p119
      %p121 = scmp.ne.s32.totalorder %s113, %s115
      %p122 = scmp.eq.s32.totalorder %s21, 1
      %p123 = por %p121, %p122
      %p124 = scmp.ne.s32.totalorder %s115, %s116
      %p125 = scmp.eq.s32.totalorder %s21, 0
      %p126 = por %p124, %p125
      %p127 = scmp.ne.s32.totalorder %s115, %s116
      %p128 = scmp.eq.s32.totalorder %s22, 1
      %p129 = por %p127, %p128
      %p131 = scmp.ne.s32.totalorder %s116, %s130
      %p132 = scmp.eq.s32.totalorder %s22, 0
      %p133 = por %p131, %p132
      %s135 = sadd.s32 %s134, 1
      %p138 = scmp.eq.s32.totalorder %s16, 1
      %p139 = scmp.ne.s32.totalorder %s134, %s136
      %p140 = scmp.eq.s32.totalorder %s16, 0
      %p141 = por %p139, %p140
      %p142 = scmp.ne.s32.totalorder %s134, %s136
      %p143 = scmp.eq.s32.totalorder %s21, 1
      %p144 = por %p142, %p143
      %p145 = scmp.ne.s32.totalorder %s136, %s137
      %p146 = scmp.eq.s32.totalorder %s21, 0
      %p147 = por %p145, %p146
      %p148 = scmp.ne.s32.totalorder %s136, %s137
      %p149 = scmp.eq.s32.totalorder %s22, 1
      %p150 = por %p148, %p149
      %p152 = scmp.ne.s32.totalorder %s137, %s151
      %p153 = scmp.eq.s32.totalorder %s22, 0
      %p154 = por %p152, %p153
      %s156 = sadd.s32 %s155, 1
      %p159 = scmp.eq.s32.totalorder %s16, 1
      %p160 = scmp.ne.s32.totalorder %s155, %s157
      %p161 = scmp.eq.s32.totalorder %s16, 0
      %p162 = por %p160, %p161
      %p163 = scmp.ne.s32.totalorder %s155, %s157
      %p164 = scmp.eq.s32.totalorder %s21, 1
      %p165 = por %p163, %p164
      %p166 = scmp.ne.s32.totalorder %s157, %s158
      %p167 = scmp.eq.s32.totalorder %s21, 0
      %p168 = por %p166, %p167
      %p169 = scmp.ne.s32.totalorder %s157, %s158
      %p170 = scmp.eq.s32.totalorder %s22, 1
      %p171 = por %p169, %p170
      %p173 = scmp.ne.s32.totalorder %s158, %s172
      %p174 = scmp.eq.s32.totalorder %s22, 0
      %p175 = por %p173, %p174
      %s176 = ssub.s32 %s16, %s23
      %p177 = scmp.eq.s32.totalorder %s176, 0
      %s179 = sadd.s32 %s178, 1
      %s180 = scalar_select %p177, %s178, %s179
      %p183 = pneg %p177
      %p184 = scmp.eq.s32.totalorder %s16, 1
      %p185 = por %p183, %p184
      %p186 = scmp.ne.s32.totalorder %s178, %s181
      %p187 = scmp.eq.s32.totalorder %s16, 0
      %p188 = por %p186, %p187
      %p189 = scmp.ne.s32.totalorder %s178, %s181
      %p190 = scmp.eq.s32.totalorder %s21, 1
      %p191 = por %p189, %p190
      %p192 = scmp.ne.s32.totalorder %s181, %s182
      %p193 = scmp.eq.s32.totalorder %s21, 0
      %p194 = por %p192, %p193
      %p195 = scmp.ne.s32.totalorder %s181, %s182
      %p196 = scmp.eq.s32.totalorder %s22, 1
      %p197 = por %p195, %p196
      %p199 = scmp.ne.s32.totalorder %s182, %s198
      %p200 = scmp.eq.s32.totalorder %s22, 0
      %p201 = por %p199, %p200
      %p202 = scmp.le.s32.totalorder 1, %s16
      %p203 = scmp.lt.s32.totalorder %s16, 3
      %p204 = pnand %p202, %p203
      %p205 = pneg %p204
      // Predicated region
      $region9: #{cnn_block_forward.1} parent=5 // pred_check
        _
      $region10: #{cnn_block_forward.1} parent=5 // pred_check_branch
        %207 = sbr.rel (%p204) target = $region12
      $region11: #{cnn_block_forward.1} parent=5 // pred_region
        %s208 = ssub.s32 %s16, 1
        // Predicated region
        $region13: #{cnn_block_forward.1} parent=11 // pred_check
          %p209 = pneg %p63
        $region14: #{cnn_block_forward.1} parent=11 // pred_check_branch
          %211 = sbr.rel (%p209) target = $region16
        $region15: #{cnn_block_forward.1} parent=11 // pred_region
          _
        $region16: #{cnn_block_forward.1} parent=11 // pred_fallthru
          _
        // Predicated region
        $region17: #{cnn_block_forward.1} parent=11 // pred_check
          %p212 = pneg %p84
        $region18: #{cnn_block_forward.1} parent=11 // pred_check_branch
          %214 = sbr.rel (%p212) target = $region20
        $region19: #{cnn_block_forward.1} parent=11 // pred_region
          _
        $region20: #{cnn_block_forward.1} parent=11 // pred_fallthru
          _
        // Predicated region
        $region21: #{cnn_block_forward.1} parent=11 // pred_check
          %p215 = pneg %p105
        $region22: #{cnn_block_forward.1} parent=11 // pred_check_branch
          %217 = sbr.rel (%p215) target = $region24
        $region23: #{cnn_block_forward.1} parent=11 // pred_region
          _
        $region24: #{cnn_block_forward.1} parent=11 // pred_fallthru
          _
        // Predicated region
        $region25: #{cnn_block_forward.1} parent=11 // pred_check
          %p218 = pneg %p126
        $region26: #{cnn_block_forward.1} parent=11 // pred_check_branch
          %220 = sbr.rel (%p218) target = $region28
        $region27: #{cnn_block_forward.1} parent=11 // pred_region
          _
        $region28: #{cnn_block_forward.1} parent=11 // pred_fallthru
          _
        // Predicated region
        $region29: #{cnn_block_forward.1} parent=11 // pred_check
          %p221 = pneg %p147
        $region30: #{cnn_block_forward.1} parent=11 // pred_check_branch
          %223 = sbr.rel (%p221) target = $region32
        $region31: #{cnn_block_forward.1} parent=11 // pred_region
          _
        $region32: #{cnn_block_forward.1} parent=11 // pred_fallthru
          _
        // Predicated region
        $region33: #{cnn_block_forward.1} parent=11 // pred_check
          %p224 = pneg %p168
        $region34: #{cnn_block_forward.1} parent=11 // pred_check_branch
          %226 = sbr.rel (%p224) target = $region36
        $region35: #{cnn_block_forward.1} parent=11 // pred_region
          _
        $region36: #{cnn_block_forward.1} parent=11 // pred_fallthru
          _
      $region12: #{cnn_block_forward.1} parent=5 // pred_fallthru
        _
      %p227 = scmp.lt.s32.totalorder %s16, 2
      // Predicated region
      $region37: #{cnn_block_forward.1} parent=5 // pred_check
        %p228 = pneg %p227
      $region38: #{cnn_block_forward.1} parent=5 // pred_check_branch
        %230 = sbr.rel (%p228) target = $region40
      $region39: #{cnn_block_forward.1} parent=5 // pred_region
        // Predicated region
        $region41: #{cnn_block_forward.1} parent=39 // pred_check
          %p231 = pneg %p36
        $region42: #{cnn_block_forward.1} parent=39 // pred_check_branch
          %233 = sbr.rel (%p231) target = $region44
        $region43: #{cnn_block_forward.1} parent=39 // pred_region
          %p234 = scmp.lt.s32.totalorder %s16, 1
          %s235 = scalar_select %p234, %s16, 1
          %s236 = smul.addr %s235, 9
          %s237 = smul.addr %s236, 8
          %s238 = scalar_lea.vmem %s0, %s237
        $region44: #{cnn_block_forward.1} parent=39 // pred_fallthru
          _
      $region40: #{cnn_block_forward.1} parent=5 // pred_fallthru
        _
      %p239 = scmp.le.s32.totalorder 1, %s16
      %p240 = scmp.lt.s32.totalorder %s16, 3
      %p241 = pnand %p239, %p240
      %p242 = pneg %p241
      // Predicated region
      $region45: #{cnn_block_forward.1} parent=5 // pred_check
        _
      $region46: #{cnn_block_forward.1} parent=5 // pred_check_branch
        %244 = sbr.rel (%p241) target = $region48
      $region47: #{cnn_block_forward.1} parent=5 // pred_region
        %s245 = ssub.s32 %s16, 1
        %p246 = scmp.lt.s32.totalorder %s21, 1
        %s247 = scalar_select %p246, %s21, 1
        %s248 = smul.addr %s247, 9
        %s249 = smul.addr %s248, 8
        %s250 = scalar_lea.vmem %s0, %s249
        %p251 = pneg %p42
        %p252 = pneg %p39
        %p253 = pneg %p63
        %p254 = pneg %p60
        %p255 = pneg %p84
        %p256 = pneg %p81
        %p257 = pneg %p105
        %p258 = pneg %p102
        %p259 = pneg %p126
        %p260 = pneg %p123
        %p261 = pneg %p147
        %p262 = pneg %p144
        %p263 = pneg %p168
        %p264 = pneg %p165
        %p265 = pneg %p194
        %p266 = pneg %p191
        %s267 = sand.u32 %s181, 1
        %s268 = scalar_lea.sflag [#allocation3], %s267
        %s269 = sand.u32 %s181, 1
        %s270 = smul.addr %s269, 8
        %s271 = scalar_lea.vmem [#allocation2], %s270
        %p272 = scmp.lt.s32.totalorder %s21, 1
        %s273 = scalar_select %p272, %s21, 1
        %s274 = smul.addr %s273, 9
        %s275 = smul.addr %s274, 8
        %s276 = scalar_lea.vmem %s0, %s275
        %v277 = vld [vmem:[%s276] sm:$0xff]
        %v278 = vld [vmem:[%s276 + $0x8] sm:$0xff]
        %v279 = vld [vmem:[%s276 + $0x10] sm:$0xff]
        %v280 = vld [vmem:[%s276 + $0x18] sm:$0xff]
        %v281 = vld [vmem:[%s276 + $0x20] sm:$0xff]
        %v282 = vld [vmem:[%s276 + $0x28] sm:$0xff]
        %v283 = vld [vmem:[%s276 + $0x30] sm:$0xff]
        %v284 = vld [vmem:[%s276 + $0x38] sm:$0xff]
        %v285 = vld [vmem:[%s276 + $0x40] sm:$0xff]
        %290 = vrot.lane.b32.xlu0 %v277, 96
        %v291 = vpop.permute.xlu0 %290
        %292 = vrot.lane.b32.xlu0 %v278, 96
        %v293 = vpop.permute.xlu0 %292
        %294 = vrot.lane.b32.xlu0 %v279, 96
        %v295 = vpop.permute.xlu0 %294
        %296 = vrot.lane.b32.xlu0 %v280, 96
        %v297 = vpop.permute.xlu0 %296
        %vm298 = vcmask 785408
        %v299 = vsel %vm298, %v291, %v293
        %v300 = vsel %vm298, %v293, %v295
        %v301 = vsel %vm298, %v295, %v297
        %305 = vrot.lane.b32.xlu0 %v277, 64
        %v306 = vpop.permute.xlu0 %305
        %307 = vrot.lane.b32.xlu0 %v278, 64
        %v308 = vpop.permute.xlu0 %307
        %309 = vrot.lane.b32.xlu0 %v279, 64
        %v310 = vpop.permute.xlu0 %309
        %311 = vrot.lane.b32.xlu0 %v280, 64
        %v312 = vpop.permute.xlu0 %311
        %vm313 = vcmask 523264
        %v314 = vsel %vm313, %v306, %v308
        %v315 = vsel %vm313, %v308, %v310
        %v316 = vsel %vm313, %v310, %v312
        %320 = vrot.lane.b32.xlu0 %v277, 32
        %v321 = vpop.permute.xlu0 %320
        %322 = vrot.lane.b32.xlu0 %v278, 32
        %v323 = vpop.permute.xlu0 %322
        %324 = vrot.lane.b32.xlu0 %v279, 32
        %v325 = vpop.permute.xlu0 %324
        %326 = vrot.lane.b32.xlu0 %v280, 32
        %v327 = vpop.permute.xlu0 %326
        %vm328 = vcmask 261120
        %v329 = vsel %vm328, %v321, %v323
        %v330 = vsel %vm328, %v323, %v325
        %v331 = vsel %vm328, %v325, %v327
        %336 = vrot.lane.b32.xlu0 %v281, 96
        %v337 = vpop.permute.xlu0 %336
        %v338 = vsel %vm298, %v297, %v337
        %340 = vrot.lane.b32.xlu0 %v281, 64
        %v341 = vpop.permute.xlu0 %340
        %v342 = vsel %vm313, %v312, %v341
        %344 = vrot.lane.b32.xlu0 %v281, 32
        %v345 = vpop.permute.xlu0 %344
        %v346 = vsel %vm328, %v327, %v345
        %349 = vrot.lane.b32.xlu0 %v282, 96
        %v350 = vpop.permute.xlu0 %349
        %v351 = vsel %vm298, %v337, %v350
        %353 = vrot.lane.b32.xlu0 %v282, 64
        %v354 = vpop.permute.xlu0 %353
        %v355 = vsel %vm313, %v341, %v354
        %357 = vrot.lane.b32.xlu0 %v282, 32
        %v358 = vpop.permute.xlu0 %357
        %v359 = vsel %vm328, %v345, %v358
        %362 = vrot.lane.b32.xlu0 %v283, 96
        %v363 = vpop.permute.xlu0 %362
        %v364 = vsel %vm298, %v350, %v363
        %366 = vrot.lane.b32.xlu0 %v283, 64
        %v367 = vpop.permute.xlu0 %366
        %v368 = vsel %vm313, %v354, %v367
        %370 = vrot.lane.b32.xlu0 %v283, 32
        %v371 = vpop.permute.xlu0 %370
        %v372 = vsel %vm328, %v358, %v371
        %375 = vrot.lane.b32.xlu0 %v284, 96
        %v376 = vpop.permute.xlu0 %375
        %v377 = vsel %vm298, %v363, %v376
        %379 = vrot.lane.b32.xlu0 %v284, 64
        %v380 = vpop.permute.xlu0 %379
        %v381 = vsel %vm313, %v367, %v380
        %383 = vrot.lane.b32.xlu0 %v284, 32
        %v384 = vpop.permute.xlu0 %383
        %v385 = vsel %vm328, %v371, %v384
        %388 = vrot.lane.b32.xlu0 %v285, 96
        %v389 = vpop.permute.xlu0 %388
        %v390 = vsel %vm298, %v376, %v389
        %392 = vrot.lane.b32.xlu0 %v285, 64
        %v393 = vpop.permute.xlu0 %392
        %v394 = vsel %vm313, %v380, %v393
        %396 = vrot.lane.b32.xlu0 %v285, 32
        %v397 = vpop.permute.xlu0 %396
        %v398 = vsel %vm328, %v384, %v397
        %v400 = vld [vmem:[%s1] sm:$0xff]
        %v401 = vld [vmem:[%s1 + $0x8] sm:$0xff]
        %v402 = vld [vmem:[%s1 + $0x10] sm:$0xff]
        %v403 = vld [vmem:[%s1 + $0x18] sm:$0xff]
        %v404 = vld [vmem:[%s1 + $0x20] sm:$0xff]
        %v405 = vld [vmem:[%s1 + $0x28] sm:$0xff]
        %v406 = vld [vmem:[%s1 + $0x30] sm:$0xff]
        %v407 = vld [vmem:[%s1 + $0x38] sm:$0xff]
        %v408 = vld [vmem:[%s1 + $0x40] sm:$0xff]
        %v409 = vld [vmem:[%s1 + $0x48] sm:$0xff]
        %v410 = vld [vmem:[%s1 + $0x50] sm:$0xff]
        %v411 = vld [vmem:[%s1 + $0x58] sm:$0xff]
        %v412 = vld [vmem:[%s1 + $0x60] sm:$0xff]
        %v413 = vld [vmem:[%s1 + $0x68] sm:$0xff]
        %v414 = vld [vmem:[%s1 + $0x70] sm:$0xff]
        %v415 = vld [vmem:[%s1 + $0x78] sm:$0xff]
        %v416 = vld [vmem:[%s1 + $0x80] sm:$0xff]
        %v417 = vld [vmem:[%s1 + $0x88] sm:$0xff]
        %v418 = vld [vmem:[%s1 + $0x90] sm:$0xff]
        %v419 = vld [vmem:[%s1 + $0x98] sm:$0xff]
        %v420 = vld [vmem:[%s1 + $0xa0] sm:$0xff]
        %v421 = vld [vmem:[%s1 + $0xa8] sm:$0xff]
        %v422 = vld [vmem:[%s1 + $0xb0] sm:$0xff]
        %v423 = vld [vmem:[%s1 + $0xb8] sm:$0xff]
        %v424 = vld [vmem:[%s1 + $0xc0] sm:$0xff]
        %v425 = vld [vmem:[%s1 + $0xc8] sm:$0xff]
        %v426 = vld [vmem:[%s1 + $0xd0] sm:$0xff]
        %v427 = vld [vmem:[%s1 + $0xd8] sm:$0xff]
        %v428 = vld [vmem:[%s1 + $0xe0] sm:$0xff]
        %v429 = vld [vmem:[%s1 + $0xe8] sm:$0xff]
        %v430 = vld [vmem:[%s1 + $0xf0] sm:$0xff]
        %v431 = vld [vmem:[%s1 + $0xf8] sm:$0xff]
        %v432 = vld [vmem:[%s1 + $0x100] sm:$0xff]
        %v433 = vld [vmem:[%s1 + $0x108] sm:$0xff]
        %v434 = vld [vmem:[%s1 + $0x110] sm:$0xff]
        %v435 = vld [vmem:[%s1 + $0x118] sm:$0xff]
        %v436 = vld [vmem:[%s1 + $0x120] sm:$0xff]
        %v437 = vld [vmem:[%s1 + $0x128] sm:$0xff]
        %v438 = vld [vmem:[%s1 + $0x130] sm:$0xff]
        %v439 = vld [vmem:[%s1 + $0x138] sm:$0xff]
        %v440 = vld [vmem:[%s1 + $0x140] sm:$0xff]
        %v441 = vld [vmem:[%s1 + $0x148] sm:$0xff]
        %v442 = vld [vmem:[%s1 + $0x150] sm:$0xff]
        %v443 = vld [vmem:[%s1 + $0x158] sm:$0xff]
        %v444 = vld [vmem:[%s1 + $0x160] sm:$0xff]
        %v445 = vld [vmem:[%s1 + $0x168] sm:$0xff]
        %v446 = vld [vmem:[%s1 + $0x170] sm:$0xff]
        %v447 = vld [vmem:[%s1 + $0x178] sm:$0xff]
        %448 = vmatprep.subr.mxu0 0.0
        %449 = vmatpush1.msra.mxu0 %v400
        %450 = vmatprep.subr.mxu0 0.0
        %451 = vmatpush1.msra.mxu0 %v401
        %452 = vmatprep.subr.mxu0 0.0
        %453 = vmatpush1.msra.mxu0 %v402
        %454 = vmatprep.subr.mxu0 0.0
        %455 = vmatpush1.msra.mxu0 %v403
        %456 = vmatprep.subr.mxu0 0.0
        %457 = vmatpush1.msra.mxu0 %v404
        %458 = vmatprep.subr.mxu0 0.0
        %459 = vmatpush1.msra.mxu0 %v405
        %460 = vmatprep.subr.mxu0 0.0
        %461 = vmatpush1.msra.mxu0 %v406
        %462 = vmatprep.subr.mxu0 0.0
        %463 = vmatpush1.msra.mxu0 %v407
        %464 = vmatprep.subr.mxu0 0.0
        %465 = vmatpush1.msra.mxu0 %v408
        %466 = vmatprep.subr.mxu0 0.0
        %467 = vmatpush1.msra.mxu0 %v409
        %468 = vmatprep.subr.mxu0 0.0
        %469 = vmatpush1.msra.mxu0 %v410
        %470 = vmatprep.subr.mxu0 0.0
        %471 = vmatpush1.msra.mxu0 %v411
        %472 = vmatprep.subr.mxu0 0.0
        %473 = vmatpush1.msra.mxu0 %v412
        %474 = vmatprep.subr.mxu0 0.0
        %475 = vmatpush1.msra.mxu0 %v413
        %476 = vmatprep.subr.mxu0 0.0
        %477 = vmatpush1.msra.mxu0 %v414
        %478 = vmatprep.subr.mxu0 0.0
        %479 = vmatpush1.msra.mxu0 %v415
        %480 = vmatprep.subr.mxu0 0.0
        %481 = vmatpush1.msra.mxu0 %v416
        %482 = vmatprep.subr.mxu0 0.0
        %483 = vmatpush1.msra.mxu0 %v417
        %484 = vmatprep.subr.mxu0 0.0
        %485 = vmatpush1.msra.mxu0 %v418
        %486 = vmatprep.subr.mxu0 0.0
        %487 = vmatpush1.msra.mxu0 %v419
        %488 = vmatprep.subr.mxu0 0.0
        %489 = vmatpush1.msra.mxu0 %v420
        %490 = vmatprep.subr.mxu0 0.0
        %491 = vmatpush1.msra.mxu0 %v421
        %492 = vmatprep.subr.mxu0 0.0
        %493 = vmatpush1.msra.mxu0 %v422
        %494 = vmatprep.subr.mxu0 0.0
        %495 = vmatpush1.msra.mxu0 %v423
        %496 = vmatprep.subr.mxu0 0.0
        %497 = vmatpush1.msra.mxu0 %v424
        %498 = vmatprep.subr.mxu0 0.0
        %499 = vmatpush1.msra.mxu0 %v425
        %500 = vmatprep.subr.mxu0 0.0
        %501 = vmatpush1.msra.mxu0 %v426
        %502 = vmatprep.subr.mxu0 0.0
        %503 = vmatpush1.msra.mxu0 %v427
        %504 = vmatprep.subr.mxu0 0.0
        %505 = vmatpush1.msra.mxu0 %v428
        %506 = vmatprep.subr.mxu0 0.0
        %507 = vmatpush1.msra.mxu0 %v429
        %508 = vmatprep.subr.mxu0 0.0
        %509 = vmatpush1.msra.mxu0 %v430
        %510 = vmatprep.subr.mxu0 0.0
        %511 = vmatpush1.msra.mxu0 %v431
        %512 = vmatprep.mubr.f32.mxu0 %v278
        %513 = vmatmul.mubr.f32.gmra.mrb[0].mxu0 %v277
        %v514 = vpop.f32.mrb[0].mxu0
        %v515 = vadd.f32 0.0, %v514
        %v516 = vpop.f32.mrb[0].mxu0
        %517 = vmatprep.mubr.f32.mxu0 %v300
        %518 = vmatmul.mubr.f32.gmra.mrb[0].mxu0 %v299
        %v519 = vpop.f32.mrb[0].mxu0
        %v520 = vadd.f32 0.0, %v519
        %v521 = vpop.f32.mrb[0].mxu0
        %522 = vmatprep.mubr.f32.mxu0 %v315
        %523 = vmatmul.mubr.f32.gmra.mrb[0].mxu0 %v314
        %v524 = vpop.f32.mrb[0].mxu0
        %v525 = vadd.f32 0.0, %v524
        %v526 = vpop.f32.mrb[0].mxu0
        %527 = vmatprep.mubr.f32.mxu0 %v330
        %528 = vmatmul.mubr.f32.gmra.mrb[0].mxu0 %v329
        %v529 = vpop.f32.mrb[0].mxu0
        %v530 = vadd.f32 0.0, %v529
        %v531 = vpop.f32.mrb[0].mxu0
        %532 = vmatprep.mubr.f32.mxu0 %v279
        %533 = vmatmul.mubr.f32.gmra.mrb[0].mxu0 %v278
        %v534 = vpop.f32.mrb[0].mxu0
        %v535 = vadd.f32 0.0, %v534
        %v536 = vpop.f32.mrb[0].mxu0
        %537 = vmatprep.mubr.f32.mxu0 %v301
        %538 = vmatmul.mubr.f32.gmra.mrb[0].mxu0 %v300
        %v539 = vpop.f32.mrb[0].mxu0
        %v540 = vadd.f32 0.0, %v539
        %v541 = vpop.f32.mrb[0].mxu0
        %542 = vmatprep.mubr.f32.mxu0 %v316
        %543 = vmatmul.mubr.f32.gmra.mrb[0].mxu0 %v315
        %v544 = vpop.f32.mrb[0].mxu0
        %v545 = vadd.f32 0.0, %v544
        %v546 = vpop.f32.mrb[0].mxu0
        %547 = vmatprep.mubr.f32.mxu0 %v331
        %548 = vmatmul.mubr.f32.gmra.mrb[0].mxu0 %v330
        %v549 = vpop.f32.mrb[0].mxu0
        %v550 = vadd.f32 0.0, %v549
        %v551 = vpop.f32.mrb[0].mxu0
        %552 = vmatprep.mubr.f32.mxu0 %v280
        %553 = vmatmul.mubr.f32.gmra.mrb[0].mxu0 %v279
        %v554 = vpop.f32.mrb[0].mxu0
        %v555 = vadd.f32 0.0, %v554
        %v556 = vpop.f32.mrb[0].mxu0
        %557 = vmatprep.mubr.f32.mxu0 %v338
        %558 = vmatmul.mubr.f32.gmra.mrb[0].mxu0 %v301
        %v559 = vpop.f32.mrb[0].mxu0
        %v560 = vadd.f32 0.0, %v559
        %v561 = vpop.f32.mrb[0].mxu0
        %562 = vmatprep.mubr.f32.mxu0 %v342
        %563 = vmatmul.mubr.f32.gmra.mrb[0].mxu0 %v316
        %v564 = vpop.f32.mrb[0].mxu0
        %v565 = vadd.f32 0.0, %v564
        %v566 = vpop.f32.mrb[0].mxu0
        %567 = vmatprep.mubr.f32.mxu0 %v346
        %568 = vmatmul.mubr.f32.gmra.mrb[0].mxu0 %v331
        %v569 = vpop.f32.mrb[0].mxu0
        %v570 = vadd.f32 0.0, %v569
        %v571 = vpop.f32.mrb[0].mxu0
        %572 = vmatprep.mubr.f32.mxu0 %v281
        %573 = vmatmul.mubr.f32.gmra.mrb[0].mxu0 %v280
        %v574 = vpop.f32.mrb[0].mxu0
        %v575 = vadd.f32 0.0, %v574
        %v576 = vpop.f32.mrb[0].mxu0
        %577 = vmatprep.mubr.f32.mxu0 %v351
        %578 = vmatmul.mubr.f32.gmra.mrb[0].mxu0 %v338
        %v579 = vpop.f32.mrb[0].mxu0
        %v580 = vadd.f32 0.0, %v579
        %v581 = vpop.f32.mrb[0].mxu0
        %582 = vmatprep.mubr.f32.mxu0 %v355
        %583 = vmatmul.mubr.f32.gmra.mrb[0].mxu0 %v342
        %v584 = vpop.f32.mrb[0].mxu0
        %v585 = vadd.f32 0.0, %v584
        %v586 = vpop.f32.mrb[0].mxu0
        %587 = vmatprep.mubr.f32.mxu0 %v359
        %588 = vmatmul.mubr.f32.gmra.mrb[0].mxu0 %v346
        %v589 = vpop.f32.mrb[0].mxu0
        %v590 = vadd.f32 0.0, %v589
        %v591 = vpop.f32.mrb[0].mxu0
        %592 = vmatprep.mubr.f32.mxu0 %v282
        %593 = vmatmul.mubr.f32.gmra.mrb[0].mxu0 %v281
        %v594 = vpop.f32.mrb[0].mxu0
        %v595 = vadd.f32 0.0, %v594
        %v596 = vpop.f32.mrb[0].mxu0
        %597 = vmatprep.mubr.f32.mxu0 %v364
        %598 = vmatmul.mubr.f32.gmra.mrb[0].mxu0 %v351
        %v599 = vpop.f32.mrb[0].mxu0
        %v600 = vadd.f32 0.0, %v599
        %v601 = vpop.f32.mrb[0].mxu0
        %602 = vmatprep.mubr.f32.mxu0 %v368
        %603 = vmatmul.mubr.f32.gmra.mrb[0].mxu0 %v355
        %v604 = vpop.f32.mrb[0].mxu0
        %v605 = vadd.f32 0.0, %v604
        %v606 = vpop.f32.mrb[0].mxu0
        %607 = vmatprep.mubr.f32.mxu0 %v372
        %608 = vmatmul.mubr.f32.gmra.mrb[0].mxu0 %v359
        %v609 = vpop.f32.mrb[0].mxu0
        %v610 = vadd.f32 0.0, %v609
        %v611 = vpop.f32.mrb[0].mxu0
        %612 = vmatprep.mubr.f32.mxu0 %v283
        %613 = vmatmul.mubr.f32.gmra.mrb[0].mxu0 %v282
        %v614 = vpop.f32.mrb[0].mxu0
        %v615 = vadd.f32 0.0, %v614
        %v616 = vpop.f32.mrb[0].mxu0
        %617 = vmatprep.mubr.f32.mxu0 %v377
        %618 = vmatmul.mubr.f32.gmra.mrb[0].mxu0 %v364
        %v619 = vpop.f32.mrb[0].mxu0
        %v620 = vadd.f32 0.0, %v619
        %v621 = vpop.f32.mrb[0].mxu0
        %622 = vmatprep.mubr.f32.mxu0 %v381
        %623 = vmatmul.mubr.f32.gmra.mrb[0].mxu0 %v368
        %v624 = vpop.f32.mrb[0].mxu0
        %v625 = vadd.f32 0.0, %v624
        %v626 = vpop.f32.mrb[0].mxu0
        %627 = vmatprep.mubr.f32.mxu0 %v385
        %628 = vmatmul.mubr.f32.gmra.mrb[0].mxu0 %v372
        %v629 = vpop.f32.mrb[0].mxu0
        %v630 = vadd.f32 0.0, %v629
        %v631 = vpop.f32.mrb[0].mxu0
        %632 = vdwg.mxu0
        %633 = vmatprep.subr.mxu0 0.0
        %634 = vmatpush1.msra.mxu0 %v432
        %635 = vmatprep.subr.mxu0 0.0
        %636 = vmatpush1.msra.mxu0 %v433
        %637 = vmatprep.subr.mxu0 0.0
        %638 = vmatpush1.msra.mxu0 %v434
        %639 = vmatprep.subr.mxu0 0.0
        %640 = vmatpush1.msra.mxu0 %v435
        %641 = vmatprep.subr.mxu0 0.0
        %642 = vmatpush1.msra.mxu0 %v436
        %643 = vmatprep.subr.mxu0 0.0
        %644 = vmatpush1.msra.mxu0 %v437
        %645 = vmatprep.subr.mxu0 0.0
        %646 = vmatpush1.msra.mxu0 %v438
        %647 = vmatprep.subr.mxu0 0.0
        %648 = vmatpush1.msra.mxu0 %v439
        %649 = vmatprep.subr.mxu0 0.0
        %650 = vmatpush1.msra.mxu0 %v440
        %651 = vmatprep.subr.mxu0 0.0
        %652 = vmatpush1.msra.mxu0 %v441
        %653 = vmatprep.subr.mxu0 0.0
        %654 = vmatpush1.msra.mxu0 %v442
        %655 = vmatprep.subr.mxu0 0.0
        %656 = vmatpush1.msra.mxu0 %v443
        %657 = vmatprep.subr.mxu0 0.0
        %658 = vmatpush1.msra.mxu0 %v444
        %659 = vmatprep.subr.mxu0 0.0
        %660 = vmatpush1.msra.mxu0 %v445
        %661 = vmatprep.subr.mxu0 0.0
        %662 = vmatpush1.msra.mxu0 %v446
        %663 = vmatprep.subr.mxu0 0.0
        %664 = vmatpush1.msra.mxu0 %v447
        %665 = vmatprep.subr.mxu0 0.0
        %666 = vmatpush1.msra.mxu0 0.0
        %667 = vmatprep.subr.mxu0 0.0
        %668 = vmatpush1.msra.mxu0 0.0
        %669 = vmatprep.subr.mxu0 0.0
        %670 = vmatpush1.msra.mxu0 0.0
        %671 = vmatprep.subr.mxu0 0.0
        %672 = vmatpush1.msra.mxu0 0.0
        %673 = vmatprep.subr.mxu0 0.0
        %674 = vmatpush1.msra.mxu0 0.0
        %675 = vmatprep.subr.mxu0 0.0
        %676 = vmatpush1.msra.mxu0 0.0
        %677 = vmatprep.subr.mxu0 0.0
        %678 = vmatpush1.msra.mxu0 0.0
        %679 = vmatprep.subr.mxu0 0.0
        %680 = vmatpush1.msra.mxu0 0.0
        %681 = vmatprep.subr.mxu0 0.0
        %682 = vmatpush1.msra.mxu0 0.0
        %683 = vmatprep.subr.mxu0 0.0
        %684 = vmatpush1.msra.mxu0 0.0
        %685 = vmatprep.subr.mxu0 0.0
        %686 = vmatpush1.msra.mxu0 0.0
        %687 = vmatprep.subr.mxu0 0.0
        %688 = vmatpush1.msra.mxu0 0.0
        %689 = vmatprep.subr.mxu0 0.0
        %690 = vmatpush1.msra.mxu0 0.0
        %691 = vmatprep.subr.mxu0 0.0
        %692 = vmatpush1.msra.mxu0 0.0
        %693 = vmatprep.subr.mxu0 0.0
        %694 = vmatpush1.msra.mxu0 0.0
        %695 = vmatprep.subr.mxu0 0.0
        %696 = vmatpush1.msra.mxu0 0.0
        %697 = vmatprep.mubr.f32.mxu0 0.0
        %698 = vmatmul.mubr.f32.gmra.mrb[0].mxu0 %v279
        %v699 = vpop.f32.mrb[0].mxu0
        %v700 = vadd.f32 %v515, %v699
        %v701 = vpop.f32.mrb[0].mxu0
        %702 = vmatprep.mubr.f32.mxu0 0.0
        %703 = vmatmul.mubr.f32.gmra.mrb[0].mxu0 %v301
        %v704 = vpop.f32.mrb[0].mxu0
        %v705 = vadd.f32 %v520, %v704
        %v706 = vpop.f32.mrb[0].mxu0
        %707 = vmatprep.mubr.f32.mxu0 0.0
        %708 = vmatmul.mubr.f32.gmra.mrb[0].mxu0 %v316
        %v709 = vpop.f32.mrb[0].mxu0
        %v710 = vadd.f32 %v525, %v709
        %v711 = vpop.f32.mrb[0].mxu0
        %712 = vmatprep.mubr.f32.mxu0 0.0
        %713 = vmatmul.mubr.f32.gmra.mrb[0].mxu0 %v331
        %v714 = vpop.f32.mrb[0].mxu0
        %v715 = vadd.f32 %v530, %v714
        %v716 = vpop.f32.mrb[0].mxu0
        %717 = vmatprep.mubr.f32.mxu0 0.0
        %718 = vmatmul.mubr.f32.gmra.mrb[0].mxu0 %v280
        %v719 = vpop.f32.mrb[0].mxu0
        %v720 = vadd.f32 %v535, %v719
        %v721 = vpop.f32.mrb[0].mxu0
        %722 = vmatprep.mubr.f32.mxu0 0.0
        %723 = vmatmul.mubr.f32.gmra.mrb[0].mxu0 %v338
        %v724 = vpop.f32.mrb[0].mxu0
        %v725 = vadd.f32 %v540, %v724
        %v726 = vpop.f32.mrb[0].mxu0
        %727 = vmatprep.mubr.f32.mxu0 0.0
        %728 = vmatmul.mubr.f32.gmra.mrb[0].mxu0 %v342
        %v729 = vpop.f32.mrb[0].mxu0
        %v730 = vadd.f32 %v545, %v729
        %v731 = vpop.f32.mrb[0].mxu0
        %732 = vmatprep.mubr.f32.mxu0 0.0
        %733 = vmatmul.mubr.f32.gmra.mrb[0].mxu0 %v346
        %v734 = vpop.f32.mrb[0].mxu0
        %v735 = vadd.f32 %v550, %v734
        %v736 = vpop.f32.mrb[0].mxu0
        %737 = vmatprep.mubr.f32.mxu0 0.0
        %738 = vmatmul.mubr.f32.gmra.mrb[0].mxu0 %v281
        %v739 = vpop.f32.mrb[0].mxu0
        %v740 = vadd.f32 %v555, %v739
        %v741 = vpop.f32.mrb[0].mxu0
        %742 = vmatprep.mubr.f32.mxu0 0.0
        %743 = vmatmul.mubr.f32.gmra.mrb[0].mxu0 %v351
        %v744 = vpop.f32.mrb[0].mxu0
        %v745 = vadd.f32 %v560, %v744
        %v746 = vpop.f32.mrb[0].mxu0
        %747 = vmatprep.mubr.f32.mxu0 0.0
        %748 = vmatmul.mubr.f32.gmra.mrb[0].mxu0 %v355
        %v749 = vpop.f32.mrb[0].mxu0
        %v750 = vadd.f32 %v565, %v749
        %v751 = vpop.f32.mrb[0].mxu0
        %752 = vmatprep.mubr.f32.mxu0 0.0
        %753 = vmatmul.mubr.f32.gmra.mrb[0].mxu0 %v359
        %v754 = vpop.f32.mrb[0].mxu0
        %v755 = vadd.f32 %v570, %v754
        %v756 = vpop.f32.mrb[0].mxu0
        %757 = vmatprep.mubr.f32.mxu0 0.0
        %758 = vmatmul.mubr.f32.gmra.mrb[0].mxu0 %v282
        %v759 = vpop.f32.mrb[0].mxu0
        %v760 = vadd.f32 %v575, %v759
        %v761 = vpop.f32.mrb[0].mxu0
        %762 = vmatprep.mubr.f32.mxu0 0.0
        %763 = vmatmul.mubr.f32.gmra.mrb[0].mxu0 %v364
        %v764 = vpop.f32.mrb[0].mxu0
        %v765 = vadd.f32 %v580, %v764
        %v766 = vpop.f32.mrb[0].mxu0
        %767 = vmatprep.mubr.f32.mxu0 0.0
        %768 = vmatmul.mubr.f32.gmra.mrb[0].mxu0 %v368
        %v769 = vpop.f32.mrb[0].mxu0
        %v770 = vadd.f32 %v585, %v769
        %v771 = vpop.f32.mrb[0].mxu0
        %772 = vmatprep.mubr.f32.mxu0 0.0
        %773 = vmatmul.mubr.f32.gmra.mrb[0].mxu0 %v372
        %v774 = vpop.f32.mrb[0].mxu0
        %v775 = vadd.f32 %v590, %v774
        %v776 = vpop.f32.mrb[0].mxu0
        %777 = vmatprep.mubr.f32.mxu0 0.0
        %778 = vmatmul.mubr.f32.gmra.mrb[0].mxu0 %v283
        %v779 = vpop.f32.mrb[0].mxu0
        %v780 = vadd.f32 %v595, %v779
        %v781 = vpop.f32.mrb[0].mxu0
        %782 = vmatprep.mubr.f32.mxu0 0.0
        %783 = vmatmul.mubr.f32.gmra.mrb[0].mxu0 %v377
        %v784 = vpop.f32.mrb[0].mxu0
        %v785 = vadd.f32 %v600, %v784
        %v786 = vpop.f32.mrb[0].mxu0
        %787 = vmatprep.mubr.f32.mxu0 0.0
        %788 = vmatmul.mubr.f32.gmra.mrb[0].mxu0 %v381
        %v789 = vpop.f32.mrb[0].mxu0
        %v790 = vadd.f32 %v605, %v789
        %v791 = vpop.f32.mrb[0].mxu0
        %792 = vmatprep.mubr.f32.mxu0 0.0
        %793 = vmatmul.mubr.f32.gmra.mrb[0].mxu0 %v385
        %v794 = vpop.f32.mrb[0].mxu0
        %v795 = vadd.f32 %v610, %v794
        %v796 = vpop.f32.mrb[0].mxu0
        %797 = vmatprep.mubr.f32.mxu0 0.0
        %798 = vmatmul.mubr.f32.gmra.mrb[0].mxu0 %v284
        %v799 = vpop.f32.mrb[0].mxu0
        %v800 = vadd.f32 %v615, %v799
        %v801 = vpop.f32.mrb[0].mxu0
        %802 = vmatprep.mubr.f32.mxu0 0.0
        %803 = vmatmul.mubr.f32.gmra.mrb[0].mxu0 %v390
        %v804 = vpop.f32.mrb[0].mxu0
        %v805 = vadd.f32 %v620, %v804
        %v806 = vpop.f32.mrb[0].mxu0
        %807 = vmatprep.mubr.f32.mxu0 0.0
        %808 = vmatmul.mubr.f32.gmra.mrb[0].mxu0 %v394
        %v809 = vpop.f32.mrb[0].mxu0
        %v810 = vadd.f32 %v625, %v809
        %v811 = vpop.f32.mrb[0].mxu0
        %812 = vmatprep.mubr.f32.mxu0 0.0
        %813 = vmatmul.mubr.f32.gmra.mrb[0].mxu0 %v398
        %v814 = vpop.f32.mrb[0].mxu0
        %v815 = vadd.f32 %v630, %v814
        %v816 = vpop.f32.mrb[0].mxu0
        %817 = vdwg.mxu0
        %v818 = vld [vmem:[%s2] sm:$0x1]
        %v820 = vlaneseq
        %v821 = vshrl.u32 %v820, 7
        %v822 = vsub.s32 0, %v821
        %v823 = vrot.slane %v818, %v822
        %v825 = vmul.f32 %v700, %v823
        %v826 = vmul.f32 %v705, %v823
        %v827 = vmul.f32 %v710, %v823
        %v828 = vmul.f32 %v715, %v823
        %v829 = vmul.f32 %v720, %v823
        %v830 = vmul.f32 %v725, %v823
        %v831 = vmul.f32 %v730, %v823
        %v832 = vmul.f32 %v735, %v823
        %v833 = vmul.f32 %v740, %v823
        %v834 = vmul.f32 %v745, %v823
        %v835 = vmul.f32 %v750, %v823
        %v836 = vmul.f32 %v755, %v823
        %v837 = vmul.f32 %v760, %v823
        %v838 = vmul.f32 %v765, %v823
        %v839 = vmul.f32 %v770, %v823
        %v840 = vmul.f32 %v775, %v823
        %v841 = vmul.f32 %v780, %v823
        %v842 = vmul.f32 %v785, %v823
        %v843 = vmul.f32 %v790, %v823
        %v844 = vmul.f32 %v795, %v823
        %v845 = vmul.f32 %v800, %v823
        %v846 = vmul.f32 %v805, %v823
        %v847 = vmul.f32 %v810, %v823
        %v848 = vmul.f32 %v815, %v823
        %v849 = vld [vmem:[%s3] sm:$0x1]
        %v851 = vlaneseq
        %v852 = vshrl.u32 %v851, 7
        %v853 = vsub.s32 0, %v852
        %v854 = vrot.slane %v849, %v853
        %v856 = vadd.f32 %v825, %v854
        %v857 = vadd.f32 %v826, %v854
        %v858 = vadd.f32 %v827, %v854
        %v859 = vadd.f32 %v828, %v854
        %v860 = vadd.f32 %v829, %v854
        %v861 = vadd.f32 %v830, %v854
        %v862 = vadd.f32 %v831, %v854
        %v863 = vadd.f32 %v832, %v854
        %v864 = vadd.f32 %v833, %v854
        %v865 = vadd.f32 %v834, %v854
        %v866 = vadd.f32 %v835, %v854
        %v867 = vadd.f32 %v836, %v854
        %v868 = vadd.f32 %v837, %v854
        %v869 = vadd.f32 %v838, %v854
        %v870 = vadd.f32 %v839, %v854
        %v871 = vadd.f32 %v840, %v854
        %v872 = vadd.f32 %v841, %v854
        %v873 = vadd.f32 %v842, %v854
        %v874 = vadd.f32 %v843, %v854
        %v875 = vadd.f32 %v844, %v854
        %v876 = vadd.f32 %v845, %v854
        %v877 = vadd.f32 %v846, %v854
        %v878 = vadd.f32 %v847, %v854
        %v879 = vadd.f32 %v848, %v854
        %v880 = vmax.f32 %v856, 0.0
        %v881 = vmax.f32 %v857, 0.0
        %v882 = vmax.f32 %v858, 0.0
        %v883 = vmax.f32 %v859, 0.0
        %v884 = vmax.f32 %v860, 0.0
        %v885 = vmax.f32 %v861, 0.0
        %v886 = vmax.f32 %v862, 0.0
        %v887 = vmax.f32 %v863, 0.0
        %v888 = vmax.f32 %v864, 0.0
        %v889 = vmax.f32 %v865, 0.0
        %v890 = vmax.f32 %v866, 0.0
        %v891 = vmax.f32 %v867, 0.0
        %v892 = vmax.f32 %v868, 0.0
        %v893 = vmax.f32 %v869, 0.0
        %v894 = vmax.f32 %v870, 0.0
        %v895 = vmax.f32 %v871, 0.0
        %v896 = vmax.f32 %v872, 0.0
        %v897 = vmax.f32 %v873, 0.0
        %v898 = vmax.f32 %v874, 0.0
        %v899 = vmax.f32 %v875, 0.0
        %v900 = vmax.f32 %v876, 0.0
        %v901 = vmax.f32 %v877, 0.0
        %v902 = vmax.f32 %v878, 0.0
        %v903 = vmax.f32 %v879, 0.0
        %v904 = vsel %vm313, %v880, -inf
        %v905 = vsel %vm313, %v881, -inf
        %v906 = vmax.f32 %v904, %v905
        %v907 = vsel %vm313, %v882, -inf
        %v908 = vmax.f32 %v906, %v907
        %v909 = vsel %vm313, %v883, -inf
        %v910 = vsel %vm313, %v884, -inf
        %v911 = vmax.f32 %v909, %v910
        %v912 = vsel %vm313, %v885, -inf
        %v913 = vmax.f32 %v911, %v912
        %v914 = vsel %vm313, %v886, -inf
        %v915 = vsel %vm313, %v887, -inf
        %v916 = vmax.f32 %v914, %v915
        %v917 = vsel %vm313, %v888, -inf
        %v918 = vmax.f32 %v916, %v917
        %v919 = vsel %vm313, %v889, -inf
        %v920 = vsel %vm313, %v890, -inf
        %v921 = vmax.f32 %v919, %v920
        %v922 = vsel %vm313, %v891, -inf
        %v923 = vmax.f32 %v921, %v922
        %v924 = vsel %vm313, %v892, -inf
        %v925 = vsel %vm313, %v893, -inf
        %v926 = vmax.f32 %v924, %v925
        %v927 = vsel %vm313, %v894, -inf
        %v928 = vmax.f32 %v926, %v927
        %v929 = vsel %vm313, %v895, -inf
        %v930 = vsel %vm313, %v896, -inf
        %v931 = vmax.f32 %v929, %v930
        %v932 = vsel %vm313, %v897, -inf
        %v933 = vmax.f32 %v931, %v932
        %v934 = vsel %vm313, %v898, -inf
        %v935 = vsel %vm313, %v899, -inf
        %v936 = vmax.f32 %v934, %v935
        %v937 = vsel %vm313, %v900, -inf
        %v938 = vmax.f32 %v936, %v937
        %v939 = vsel %vm313, %v901, -inf
        %v940 = vsel %vm313, %v902, -inf
        %v941 = vmax.f32 %v939, %v940
        %v942 = vsel %vm313, %v903, -inf
        %v943 = vmax.f32 %v941, %v942
        %v952 = vrot.slane %v908, 7
        %v953 = vrot.slane %v913, 7
        %v954 = vrot.slane %v918, 7
        %v955 = vrot.slane %v923, 7
        %v956 = vrot.slane %v928, 7
        %v957 = vrot.slane %v933, 7
        %v958 = vrot.slane %v938, 7
        %v959 = vrot.slane %v943, 7
        %vm968 = vcmask 1040384
        %v969 = vsel %vm968, 0.0, %v952
        %v970 = vsel %vm968, 0.0, %v953
        %v971 = vsel %vm968, 0.0, %v954
        %v972 = vsel %vm968, 0.0, %v955
        %v973 = vsel %vm968, 0.0, %v956
        %v974 = vsel %vm968, 0.0, %v957
        %v975 = vsel %vm968, 0.0, %v958
        %v976 = vsel %vm968, 0.0, %v959
        %v977 = vsel %vm968, %v952, 0.0
        %v978 = vsel %vm968, %v953, 0.0
        %v979 = vsel %vm968, %v954, 0.0
        %v980 = vsel %vm968, %v955, 0.0
        %v981 = vsel %vm968, %v956, 0.0
        %v982 = vsel %vm968, %v957, 0.0
        %v983 = vsel %vm968, %v958, 0.0
        %v984 = vsel %vm968, %v959, 0.0
        %988 = vrot.lane.b32.xlu0 %v970, 64
        %v989 = vpop.permute.xlu0 %988
        %990 = vrot.lane.b32.xlu0 %v971, 64
        %v991 = vpop.permute.xlu0 %990
        %992 = vrot.lane.b32.xlu0 %v972, 64
        %v993 = vpop.permute.xlu0 %992
        %999 = vrot.lane.b32.xlu0 %v973, 64
        %v1000 = vpop.permute.xlu0 %999
        %1001 = vrot.lane.b32.xlu0 %v974, 64
        %v1002 = vpop.permute.xlu0 %1001
        %1007 = vrot.lane.b32.xlu0 %v975, 64
        %v1008 = vpop.permute.xlu0 %1007
        %1009 = vrot.lane.b32.xlu0 %v976, 64
        %v1010 = vpop.permute.xlu0 %1009
        %vm1017 = vcmask 1046528
        %v1018 = vrot.slane %v969, 1
        %v1019 = vrot.slane %v977, 1
        %v1020 = vsel %vm1017, %v1018, %v1019
        %v1021 = vrot.slane %v970, 1
        %v1022 = vrot.slane %v978, 1
        %v1023 = vsel %vm1017, %v1021, %v1022
        %v1024 = vrot.slane %v971, 1
        %v1025 = vrot.slane %v979, 1
        %v1026 = vsel %vm1017, %v1024, %v1025
        %v1031 = vrot.slane %v972, 1
        %v1032 = vrot.slane %v980, 1
        %v1033 = vsel %vm1017, %v1031, %v1032
        %1034 = vrot.lane.b32.xlu0 %v1023, 64
        %v1035 = vpop.permute.xlu0 %1034
        %1036 = vrot.lane.b32.xlu0 %v1026, 64
        %v1037 = vpop.permute.xlu0 %1036
        %1038 = vrot.lane.b32.xlu0 %v1033, 64
        %v1039 = vpop.permute.xlu0 %1038
        %v1044 = vrot.slane %v973, 1
        %v1045 = vrot.slane %v981, 1
        %v1046 = vsel %vm1017, %v1044, %v1045
        %v1050 = vrot.slane %v974, 1
        %v1051 = vrot.slane %v982, 1
        %v1052 = vsel %vm1017, %v1050, %v1051
        %1053 = vrot.lane.b32.xlu0 %v1046, 64
        %v1054 = vpop.permute.xlu0 %1053
        %1055 = vrot.lane.b32.xlu0 %v1052, 64
        %v1056 = vpop.permute.xlu0 %1055
        %v1060 = vrot.slane %v975, 1
        %v1061 = vrot.slane %v983, 1
        %v1062 = vsel %vm1017, %v1060, %v1061
        %v1066 = vrot.slane %v976, 1
        %v1067 = vrot.slane %v984, 1
        %v1068 = vsel %vm1017, %v1066, %v1067
        %1069 = vrot.lane.b32.xlu0 %v1062, 64
        %v1070 = vpop.permute.xlu0 %1069
        %1071 = vrot.lane.b32.xlu0 %v1068, 64
        %v1072 = vpop.permute.xlu0 %1071
        %vm1075 = vcmask 1045504
        %v1076 = vrot.slane %v969, 2
        %v1077 = vrot.slane %v977, 2
        %v1078 = vsel %vm1075, %v1076, %v1077
        %v1079 = vrot.slane %v970, 2
        %v1080 = vrot.slane %v978, 2
        %v1081 = vsel %vm1075, %v1079, %v1080
        %v1082 = vrot.slane %v971, 2
        %v1083 = vrot.slane %v979, 2
        %v1084 = vsel %vm1075, %v1082, %v1083
        %v1088 = vrot.slane %v972, 2
        %v1089 = vrot.slane %v980, 2
        %v1090 = vsel %vm1075, %v1088, %v1089
        %1091 = vrot.lane.b32.xlu0 %v1081, 64
        %v1092 = vpop.permute.xlu0 %1091
        %1093 = vrot.lane.b32.xlu0 %v1084, 64
        %v1094 = vpop.permute.xlu0 %1093
        %1095 = vrot.lane.b32.xlu0 %v1090, 64
        %v1096 = vpop.permute.xlu0 %1095
        %v1100 = vrot.slane %v973, 2
        %v1101 = vrot.slane %v981, 2
        %v1102 = vsel %vm1075, %v1100, %v1101
        %v1105 = vrot.slane %v974, 2
        %v1106 = vrot.slane %v982, 2
        %v1107 = vsel %vm1075, %v1105, %v1106
        %1108 = vrot.lane.b32.xlu0 %v1102, 64
        %v1109 = vpop.permute.xlu0 %1108
        %1110 = vrot.lane.b32.xlu0 %v1107, 64
        %v1111 = vpop.permute.xlu0 %1110
        %v1114 = vsel %vm313, %v969, %v989
        %v1115 = vsel %vm313, %v970, %v991
        %v1116 = vsel %vm313, %v971, %v993
        %v1117 = vsel %vm313, %v972, %v1000
        %v1118 = vsel %vm313, %v973, %v1002
        %v1119 = vsel %vm313, %v974, %v1008
        %v1120 = vsel %vm313, %v975, %v1010
        %v1121 = vsel %vm313, %v1020, %v1035
        %v1122 = vsel %vm313, %v1023, %v1037
        %v1123 = vsel %vm313, %v1026, %v1039
        %v1124 = vsel %vm313, %v1033, %v1054
        %v1125 = vsel %vm313, %v1046, %v1056
        %v1126 = vsel %vm313, %v1052, %v1070
        %v1127 = vsel %vm313, %v1062, %v1072
        %v1128 = vsel %vm313, %v1078, %v1092
        %v1129 = vsel %vm313, %v1081, %v1094
        %v1130 = vsel %vm313, %v1084, %v1096
        %v1131 = vsel %vm313, %v1090, %v1109
        %v1132 = vsel %vm313, %v1102, %v1111
        %1133 = vrot.lane.b32.xlu0 %v982, 64
        %v1134 = vpop.permute.xlu0 %1133
        %1135 = vrot.lane.b32.xlu0 %v983, 64
        %v1136 = vpop.permute.xlu0 %1135
        %1137 = vrot.lane.b32.xlu0 %v984, 64
        %v1138 = vpop.permute.xlu0 %1137
        %v1142 = vsel %vm313, %v981, %v1134
        %v1143 = vsel %vm313, %v982, %v1136
        %v1144 = vsel %vm313, %v983, %v1138
        %v1151 = vrot.slane %v1118, 2
        %v1152 = vrot.slane %v1142, 2
        %v1153 = vsel %vm1075, %v1151, %v1152
        %v1154 = vrot.slane %v1119, 2
        %v1155 = vrot.slane %v1143, 2
        %v1156 = vsel %vm1075, %v1154, %v1155
        %v1157 = vrot.slane %v1120, 2
        %v1158 = vrot.slane %v1144, 2
        %v1159 = vsel %vm1075, %v1157, %v1158
        %v1163 = vld [vmem:[%s4] sm:$0xff]
        %v1164 = vld [vmem:[%s4 + $0x8] sm:$0xff]
        %v1165 = vld [vmem:[%s4 + $0x10] sm:$0xff]
        %v1166 = vld [vmem:[%s4 + $0x18] sm:$0xff]
        %v1167 = vld [vmem:[%s4 + $0x20] sm:$0xff]
        %v1168 = vld [vmem:[%s4 + $0x28] sm:$0xff]
        %v1169 = vld [vmem:[%s4 + $0x30] sm:$0xff]
        %v1170 = vld [vmem:[%s4 + $0x38] sm:$0xff]
        %v1171 = vld [vmem:[%s4 + $0x40] sm:$0xff]
        %v1172 = vld [vmem:[%s4 + $0x48] sm:$0xff]
        %v1173 = vld [vmem:[%s4 + $0x50] sm:$0xff]
        %v1174 = vld [vmem:[%s4 + $0x58] sm:$0xff]
        %v1175 = vld [vmem:[%s4 + $0x60] sm:$0xff]
        %v1176 = vld [vmem:[%s4 + $0x68] sm:$0xff]
        %v1177 = vld [vmem:[%s4 + $0x70] sm:$0xff]
        %v1178 = vld [vmem:[%s4 + $0x78] sm:$0xff]
        %v1179 = vld [vmem:[%s4 + $0x80] sm:$0xff]
        %v1180 = vld [vmem:[%s4 + $0x88] sm:$0xff]
        %v1181 = vld [vmem:[%s4 + $0x90] sm:$0xff]
        %v1182 = vld [vmem:[%s4 + $0x98] sm:$0xff]
        %v1183 = vld [vmem:[%s4 + $0xa0] sm:$0xff]
        %v1184 = vld [vmem:[%s4 + $0xa8] sm:$0xff]
        %v1185 = vld [vmem:[%s4 + $0xb0] sm:$0xff]
        %v1186 = vld [vmem:[%s4 + $0xb8] sm:$0xff]
        %v1187 = vld [vmem:[%s4 + $0xc0] sm:$0xff]
        %v1188 = vld [vmem:[%s4 + $0xc8] sm:$0xff]
        %v1189 = vld [vmem:[%s4 + $0xd0] sm:$0xff]
        %v1190 = vld [vmem:[%s4 + $0xd8] sm:$0xff]
        %v1191 = vld [vmem:[%s4 + $0xe0] sm:$0xff]
        %v1192 = vld [vmem:[%s4 + $0xe8] sm:$0xff]
        %v1193 = vld [vmem:[%s4 + $0xf0] sm:$0xff]
        %v1194 = vld [vmem:[%s4 + $0xf8] sm:$0xff]
        %v1195 = vld [vmem:[%s4 + $0x100] sm:$0xff]
        %v1196 = vld [vmem:[%s4 + $0x108] sm:$0xff]
        %v1197 = vld [vmem:[%s4 + $0x110] sm:$0xff]
        %v1198 = vld [vmem:[%s4 + $0x118] sm:$0xff]
        %v1199 = vld [vmem:[%s4 + $0x120] sm:$0xff]
        %v1200 = vld [vmem:[%s4 + $0x128] sm:$0xff]
        %v1201 = vld [vmem:[%s4 + $0x130] sm:$0xff]
        %v1202 = vld [vmem:[%s4 + $0x138] sm:$0xff]
        %v1203 = vld [vmem:[%s4 + $0x140] sm:$0xff]
        %v1204 = vld [vmem:[%s4 + $0x148] sm:$0xff]
        %v1205 = vld [vmem:[%s4 + $0x150] sm:$0xff]
        %v1206 = vld [vmem:[%s4 + $0x158] sm:$0xff]
        %v1207 = vld [vmem:[%s4 + $0x160] sm:$0xff]
        %v1208 = vld [vmem:[%s4 + $0x168] sm:$0xff]
        %v1209 = vld [vmem:[%s4 + $0x170] sm:$0xff]
        %v1210 = vld [vmem:[%s4 + $0x178] sm:$0xff]
        %v1211 = vld [vmem:[%s4 + $0x180] sm:$0xff]
        %v1212 = vld [vmem:[%s4 + $0x188] sm:$0xff]
        %v1213 = vld [vmem:[%s4 + $0x190] sm:$0xff]
        %v1214 = vld [vmem:[%s4 + $0x198] sm:$0xff]
        %v1215 = vld [vmem:[%s4 + $0x1a0] sm:$0xff]
        %v1216 = vld [vmem:[%s4 + $0x1a8] sm:$0xff]
        %v1217 = vld [vmem:[%s4 + $0x1b0] sm:$0xff]
        %v1218 = vld [vmem:[%s4 + $0x1b8] sm:$0xff]
        %v1219 = vld [vmem:[%s4 + $0x1c0] sm:$0xff]
        %v1220 = vld [vmem:[%s4 + $0x1c8] sm:$0xff]
        %v1221 = vld [vmem:[%s4 + $0x1d0] sm:$0xff]
        %v1222 = vld [vmem:[%s4 + $0x1d8] sm:$0xff]
        %v1223 = vld [vmem:[%s4 + $0x1e0] sm:$0xff]
        %v1224 = vld [vmem:[%s4 + $0x1e8] sm:$0xff]
        %v1225 = vld [vmem:[%s4 + $0x1f0] sm:$0xff]
        %v1226 = vld [vmem:[%s4 + $0x1f8] sm:$0xff]
        %v1227 = vld [vmem:[%s4 + $0x200] sm:$0xff]
        %v1228 = vld [vmem:[%s4 + $0x208] sm:$0xff]
        %v1229 = vld [vmem:[%s4 + $0x210] sm:$0xff]
        %v1230 = vld [vmem:[%s4 + $0x218] sm:$0xff]
        %v1231 = vld [vmem:[%s4 + $0x220] sm:$0xff]
        %v1232 = vld [vmem:[%s4 + $0x228] sm:$0xff]
        %v1233 = vld [vmem:[%s4 + $0x230] sm:$0xff]
        %v1234 = vld [vmem:[%s4 + $0x238] sm:$0xff]
        %v1235 = vld [vmem:[%s4 + $0x240] sm:$0xff]
        %v1236 = vld [vmem:[%s4 + $0x248] sm:$0xff]
        %v1237 = vld [vmem:[%s4 + $0x250] sm:$0xff]
        %v1238 = vld [vmem:[%s4 + $0x258] sm:$0xff]
        %v1239 = vld [vmem:[%s4 + $0x260] sm:$0xff]
        %v1240 = vld [vmem:[%s4 + $0x268] sm:$0xff]
        %v1241 = vld [vmem:[%s4 + $0x270] sm:$0xff]
        %v1242 = vld [vmem:[%s4 + $0x278] sm:$0xff]
        %v1243 = vld [vmem:[%s4 + $0x280] sm:$0xff]
        %v1244 = vld [vmem:[%s4 + $0x288] sm:$0xff]
        %v1245 = vld [vmem:[%s4 + $0x290] sm:$0xff]
        %v1246 = vld [vmem:[%s4 + $0x298] sm:$0xff]
        %v1247 = vld [vmem:[%s4 + $0x2a0] sm:$0xff]
        %v1248 = vld [vmem:[%s4 + $0x2a8] sm:$0xff]
        %v1249 = vld [vmem:[%s4 + $0x2b0] sm:$0xff]
        %v1250 = vld [vmem:[%s4 + $0x2b8] sm:$0xff]
        %v1251 = vld [vmem:[%s4 + $0x2c0] sm:$0xff]
        %v1252 = vld [vmem:[%s4 + $0x2c8] sm:$0xff]
        %v1253 = vld [vmem:[%s4 + $0x2d0] sm:$0xff]
        %v1254 = vld [vmem:[%s4 + $0x2d8] sm:$0xff]
        %v1255 = vld [vmem:[%s4 + $0x2e0] sm:$0xff]
        %v1256 = vld [vmem:[%s4 + $0x2e8] sm:$0xff]
        %v1257 = vld [vmem:[%s4 + $0x2f0] sm:$0xff]
        %v1258 = vld [vmem:[%s4 + $0x2f8] sm:$0xff]
        %v1259 = vld [vmem:[%s4 + $0x300] sm:$0xff]
        %v1260 = vld [vmem:[%s4 + $0x308] sm:$0xff]
        %v1261 = vld [vmem:[%s4 + $0x310] sm:$0xff]
        %v1262 = vld [vmem:[%s4 + $0x318] sm:$0xff]
        %v1263 = vld [vmem:[%s4 + $0x320] sm:$0xff]
        %v1264 = vld [vmem:[%s4 + $0x328] sm:$0xff]
        %v1265 = vld [vmem:[%s4 + $0x330] sm:$0xff]
        %v1266 = vld [vmem:[%s4 + $0x338] sm:$0xff]
        %v1267 = vld [vmem:[%s4 + $0x340] sm:$0xff]
        %v1268 = vld [vmem:[%s4 + $0x348] sm:$0xff]
        %v1269 = vld [vmem:[%s4 + $0x350] sm:$0xff]
        %v1270 = vld [vmem:[%s4 + $0x358] sm:$0xff]
        %v1271 = vld [vmem:[%s4 + $0x360] sm:$0xff]
        %v1272 = vld [vmem:[%s4 + $0x368] sm:$0xff]
        %v1273 = vld [vmem:[%s4 + $0x370] sm:$0xff]
        %v1274 = vld [vmem:[%s4 + $0x378] sm:$0xff]
        %v1275 = vld [vmem:[%s4 + $0x380] sm:$0xff]
        %v1276 = vld [vmem:[%s4 + $0x388] sm:$0xff]
        %v1277 = vld [vmem:[%s4 + $0x390] sm:$0xff]
        %v1278 = vld [vmem:[%s4 + $0x398] sm:$0xff]
        %v1279 = vld [vmem:[%s4 + $0x3a0] sm:$0xff]
        %v1280 = vld [vmem:[%s4 + $0x3a8] sm:$0xff]
        %v1281 = vld [vmem:[%s4 + $0x3b0] sm:$0xff]
        %v1282 = vld [vmem:[%s4 + $0x3b8] sm:$0xff]
        %v1283 = vld [vmem:[%s4 + $0x3c0] sm:$0xff]
        %v1284 = vld [vmem:[%s4 + $0x3c8] sm:$0xff]
        %v1285 = vld [vmem:[%s4 + $0x3d0] sm:$0xff]
        %v1286 = vld [vmem:[%s4 + $0x3d8] sm:$0xff]
        %v1287 = vld [vmem:[%s4 + $0x3e0] sm:$0xff]
        %v1288 = vld [vmem:[%s4 + $0x3e8] sm:$0xff]
        %v1289 = vld [vmem:[%s4 + $0x3f0] sm:$0xff]
        %v1290 = vld [vmem:[%s4 + $0x3f8] sm:$0xff]
        %v1291 = vld [vmem:[%s4 + $0x400] sm:$0xff]
        %v1292 = vld [vmem:[%s4 + $0x408] sm:$0xff]
        %v1293 = vld [vmem:[%s4 + $0x410] sm:$0xff]
        %v1294 = vld [vmem:[%s4 + $0x418] sm:$0xff]
        %v1295 = vld [vmem:[%s4 + $0x420] sm:$0xff]
        %v1296 = vld [vmem:[%s4 + $0x428] sm:$0xff]
        %v1297 = vld [vmem:[%s4 + $0x430] sm:$0xff]
        %v1298 = vld [vmem:[%s4 + $0x438] sm:$0xff]
        %v1299 = vld [vmem:[%s4 + $0x440] sm:$0xff]
        %v1300 = vld [vmem:[%s4 + $0x448] sm:$0xff]
        %v1301 = vld [vmem:[%s4 + $0x450] sm:$0xff]
        %v1302 = vld [vmem:[%s4 + $0x458] sm:$0xff]
        %v1303 = vld [vmem:[%s4 + $0x460] sm:$0xff]
        %v1304 = vld [vmem:[%s4 + $0x468] sm:$0xff]
        %v1305 = vld [vmem:[%s4 + $0x470] sm:$0xff]
        %v1306 = vld [vmem:[%s4 + $0x478] sm:$0xff]
        %1307 = vmatprep.subr.mxu0 0.0
        %1308 = vmatpush1.msra.mxu0 %v1163
        %1309 = vmatprep.subr.mxu0 0.0
        %1310 = vmatpush1.msra.mxu0 %v1164
        %1311 = vmatprep.subr.mxu0 0.0
        %1312 = vmatpush1.msra.mxu0 %v1165
        %1313 = vmatprep.subr.mxu0 0.0
        %1314 = vmatpush1.msra.mxu0 %v1166
        %1315 = vmatprep.subr.mxu0 0.0
        %1316 = vmatpush1.msra.mxu0 %v1167
        %1317 = vmatprep.subr.mxu0 0.0
        %1318 = vmatpush1.msra.mxu0 %v1168
        %1319 = vmatprep.subr.mxu0 0.0
        %1320 = vmatpush1.msra.mxu0 %v1169
        %1321 = vmatprep.subr.mxu0 0.0
        %1322 = vmatpush1.msra.mxu0 %v1170
        %1323 = vmatprep.subr.mxu0 0.0
        %1324 = vmatpush1.msra.mxu0 %v1171
        %1325 = vmatprep.subr.mxu0 0.0
        %1326 = vmatpush1.msra.mxu0 %v1172
        %1327 = vmatprep.subr.mxu0 0.0
        %1328 = vmatpush1.msra.mxu0 %v1173
        %1329 = vmatprep.subr.mxu0 0.0
        %1330 = vmatpush1.msra.mxu0 %v1174
        %1331 = vmatprep.subr.mxu0 0.0
        %1332 = vmatpush1.msra.mxu0 %v1175
        %1333 = vmatprep.subr.mxu0 0.0
        %1334 = vmatpush1.msra.mxu0 %v1176
        %1335 = vmatprep.subr.mxu0 0.0
        %1336 = vmatpush1.msra.mxu0 %v1177
        %1337 = vmatprep.subr.mxu0 0.0
        %1338 = vmatpush1.msra.mxu0 %v1178
        %1339 = vmatprep.subr.mxu0 0.0
        %1340 = vmatpush1.msra.mxu0 %v1179
        %1341 = vmatprep.subr.mxu0 0.0
        %1342 = vmatpush1.msra.mxu0 %v1180
        %1343 = vmatprep.subr.mxu0 0.0
        %1344 = vmatpush1.msra.mxu0 %v1181
        %1345 = vmatprep.subr.mxu0 0.0
        %1346 = vmatpush1.msra.mxu0 %v1182
        %1347 = vmatprep.subr.mxu0 0.0
        %1348 = vmatpush1.msra.mxu0 %v1183
        %1349 = vmatprep.subr.mxu0 0.0
        %1350 = vmatpush1.msra.mxu0 %v1184
        %1351 = vmatprep.subr.mxu0 0.0
        %1352 = vmatpush1.msra.mxu0 %v1185
        %1353 = vmatprep.subr.mxu0 0.0
        %1354 = vmatpush1.msra.mxu0 %v1186
        %1355 = vmatprep.subr.mxu0 0.0
        %1356 = vmatpush1.msra.mxu0 %v1187
        %1357 = vmatprep.subr.mxu0 0.0
        %1358 = vmatpush1.msra.mxu0 %v1188
        %1359 = vmatprep.subr.mxu0 0.0
        %1360 = vmatpush1.msra.mxu0 %v1189
        %1361 = vmatprep.subr.mxu0 0.0
        %1362 = vmatpush1.msra.mxu0 %v1190
        %1363 = vmatprep.subr.mxu0 0.0
        %1364 = vmatpush1.msra.mxu0 %v1191
        %1365 = vmatprep.subr.mxu0 0.0
        %1366 = vmatpush1.msra.mxu0 %v1192
        %1367 = vmatprep.subr.mxu0 0.0
        %1368 = vmatpush1.msra.mxu0 %v1193
        %1369 = vmatprep.subr.mxu0 0.0
        %1370 = vmatpush1.msra.mxu0 %v1194
        %1371 = vmatprep.mubr.f32.mxu0 %v1116
        %1372 = vmatmul.mubr.f32.gmra.mrb[0].mxu0 %v1114
        %v1373 = vpop.f32.mrb[0].mxu0
        %v1374 = vadd.f32 0.0, %v1373
        %v1375 = vpop.f32.mrb[0].mxu0
        %1376 = vmatprep.mubr.f32.mxu0 %v1117
        %1377 = vmatmul.mubr.f32.gmra.mrb[0].mxu0 %v1115
        %v1378 = vpop.f32.mrb[0].mxu0
        %v1379 = vadd.f32 0.0, %v1378
        %v1380 = vpop.f32.mrb[0].mxu0
        %1381 = vmatprep.mubr.f32.mxu0 %v1118
        %1382 = vmatmul.mubr.f32.gmra.mrb[0].mxu0 %v1116
        %v1383 = vpop.f32.mrb[0].mxu0
        %v1384 = vadd.f32 0.0, %v1383
        %v1385 = vpop.f32.mrb[0].mxu0
        %1386 = vdwg.mxu0
        %1387 = vmatprep.subr.mxu0 0.0
        %1388 = vmatpush1.msra.mxu0 %v1195
        %1389 = vmatprep.subr.mxu0 0.0
        %1390 = vmatpush1.msra.mxu0 %v1196
        %1391 = vmatprep.subr.mxu0 0.0
        %1392 = vmatpush1.msra.mxu0 %v1197
        %1393 = vmatprep.subr.mxu0 0.0
        %1394 = vmatpush1.msra.mxu0 %v1198
        %1395 = vmatprep.subr.mxu0 0.0
        %1396 = vmatpush1.msra.mxu0 %v1199
        %1397 = vmatprep.subr.mxu0 0.0
        %1398 = vmatpush1.msra.mxu0 %v1200
        %1399 = vmatprep.subr.mxu0 0.0
        %1400 = vmatpush1.msra.mxu0 %v1201
        %1401 = vmatprep.subr.mxu0 0.0
        %1402 = vmatpush1.msra.mxu0 %v1202
        %1403 = vmatprep.subr.mxu0 0.0
        %1404 = vmatpush1.msra.mxu0 %v1203
        %1405 = vmatprep.subr.mxu0 0.0
        %1406 = vmatpush1.msra.mxu0 %v1204
        %1407 = vmatprep.subr.mxu0 0.0
        %1408 = vmatpush1.msra.mxu0 %v1205
        %1409 = vmatprep.subr.mxu0 0.0
        %1410 = vmatpush1.msra.mxu0 %v1206
        %1411 = vmatprep.subr.mxu0 0.0
        %1412 = vmatpush1.msra.mxu0 %v1207
        %1413 = vmatprep.subr.mxu0 0.0
        %1414 = vmatpush1.msra.mxu0 %v1208
        %1415 = vmatprep.subr.mxu0 0.0
        %1416 = vmatpush1.msra.mxu0 %v1209
        %1417 = vmatprep.subr.mxu0 0.0
        %1418 = vmatpush1.msra.mxu0 %v1210
        %1419 = vmatprep.subr.mxu0 0.0
        %1420 = vmatpush1.msra.mxu0 %v1211
        %1421 = vmatprep.subr.mxu0 0.0
        %1422 = vmatpush1.msra.mxu0 %v1212
        %1423 = vmatprep.subr.mxu0 0.0
        %1424 = vmatpush1.msra.mxu0 %v1213
        %1425 = vmatprep.subr.mxu0 0.0
        %1426 = vmatpush1.msra.mxu0 %v1214
        %1427 = vmatprep.subr.mxu0 0.0
        %1428 = vmatpush1.msra.mxu0 %v1215
        %1429 = vmatprep.subr.mxu0 0.0
        %1430 = vmatpush1.msra.mxu0 %v1216
        %1431 = vmatprep.subr.mxu0 0.0
        %1432 = vmatpush1.msra.mxu0 %v1217
        %1433 = vmatprep.subr.mxu0 0.0
        %1434 = vmatpush1.msra.mxu0 %v1218
        %1435 = vmatprep.subr.mxu0 0.0
        %1436 = vmatpush1.msra.mxu0 %v1219
        %1437 = vmatprep.subr.mxu0 0.0
        %1438 = vmatpush1.msra.mxu0 %v1220
        %1439 = vmatprep.subr.mxu0 0.0
        %1440 = vmatpush1.msra.mxu0 %v1221
        %1441 = vmatprep.subr.mxu0 0.0
        %1442 = vmatpush1.msra.mxu0 %v1222
        %1443 = vmatprep.subr.mxu0 0.0
        %1444 = vmatpush1.msra.mxu0 %v1223
        %1445 = vmatprep.subr.mxu0 0.0
        %1446 = vmatpush1.msra.mxu0 %v1224
        %1447 = vmatprep.subr.mxu0 0.0
        %1448 = vmatpush1.msra.mxu0 %v1225
        %1449 = vmatprep.subr.mxu0 0.0
        %1450 = vmatpush1.msra.mxu0 %v1226
        %1451 = vmatprep.mubr.f32.mxu0 %v1121
        %1452 = vmatmul.mubr.f32.gmra.mrb[0].mxu0 %v1118
        %v1453 = vpop.f32.mrb[0].mxu0
        %v1454 = vadd.f32 %v1374, %v1453
        %v1455 = vpop.f32.mrb[0].mxu0
        %1456 = vmatprep.mubr.f32.mxu0 %v1122
        %1457 = vmatmul.mubr.f32.gmra.mrb[0].mxu0 %v1119
        %v1458 = vpop.f32.mrb[0].mxu0
        %v1459 = vadd.f32 %v1379, %v1458
        %v1460 = vpop.f32.mrb[0].mxu0
        %1461 = vmatprep.mubr.f32.mxu0 %v1123
        %1462 = vmatmul.mubr.f32.gmra.mrb[0].mxu0 %v1120
        %v1463 = vpop.f32.mrb[0].mxu0
        %v1464 = vadd.f32 %v1384, %v1463
        %v1465 = vpop.f32.mrb[0].mxu0
        %1466 = vdwg.mxu0
        %1467 = vmatprep.subr.mxu0 0.0
        %1468 = vmatpush1.msra.mxu0 %v1227
        %1469 = vmatprep.subr.mxu0 0.0
        %1470 = vmatpush1.msra.mxu0 %v1228
        %1471 = vmatprep.subr.mxu0 0.0
        %1472 = vmatpush1.msra.mxu0 %v1229
        %1473 = vmatprep.subr.mxu0 0.0
        %1474 = vmatpush1.msra.mxu0 %v1230
        %1475 = vmatprep.subr.mxu0 0.0
        %1476 = vmatpush1.msra.mxu0 %v1231
        %1477 = vmatprep.subr.mxu0 0.0
        %1478 = vmatpush1.msra.mxu0 %v1232
        %1479 = vmatprep.subr.mxu0 0.0
        %1480 = vmatpush1.msra.mxu0 %v1233
        %1481 = vmatprep.subr.mxu0 0.0
        %1482 = vmatpush1.msra.mxu0 %v1234
        %1483 = vmatprep.subr.mxu0 0.0
        %1484 = vmatpush1.msra.mxu0 %v1235
        %1485 = vmatprep.subr.mxu0 0.0
        %1486 = vmatpush1.msra.mxu0 %v1236
        %1487 = vmatprep.subr.mxu0 0.0
        %1488 = vmatpush1.msra.mxu0 %v1237
        %1489 = vmatprep.subr.mxu0 0.0
        %1490 = vmatpush1.msra.mxu0 %v1238
        %1491 = vmatprep.subr.mxu0 0.0
        %1492 = vmatpush1.msra.mxu0 %v1239
        %1493 = vmatprep.subr.mxu0 0.0
        %1494 = vmatpush1.msra.mxu0 %v1240
        %1495 = vmatprep.subr.mxu0 0.0
        %1496 = vmatpush1.msra.mxu0 %v1241
        %1497 = vmatprep.subr.mxu0 0.0
        %1498 = vmatpush1.msra.mxu0 %v1242
        %1499 = vmatprep.subr.mxu0 0.0
        %1500 = vmatpush1.msra.mxu0 %v1243
        %1501 = vmatprep.subr.mxu0 0.0
        %1502 = vmatpush1.msra.mxu0 %v1244
        %1503 = vmatprep.subr.mxu0 0.0
        %1504 = vmatpush1.msra.mxu0 %v1245
        %1505 = vmatprep.subr.mxu0 0.0
        %1506 = vmatpush1.msra.mxu0 %v1246
        %1507 = vmatprep.subr.mxu0 0.0
        %1508 = vmatpush1.msra.mxu0 %v1247
        %1509 = vmatprep.subr.mxu0 0.0
        %1510 = vmatpush1.msra.mxu0 %v1248
        %1511 = vmatprep.subr.mxu0 0.0
        %1512 = vmatpush1.msra.mxu0 %v1249
        %1513 = vmatprep.subr.mxu0 0.0
        %1514 = vmatpush1.msra.mxu0 %v1250
        %1515 = vmatprep.subr.mxu0 0.0
        %1516 = vmatpush1.msra.mxu0 %v1251
        %1517 = vmatprep.subr.mxu0 0.0
        %1518 = vmatpush1.msra.mxu0 %v1252
        %1519 = vmatprep.subr.mxu0 0.0
        %1520 = vmatpush1.msra.mxu0 %v1253
        %1521 = vmatprep.subr.mxu0 0.0
        %1522 = vmatpush1.msra.mxu0 %v1254
        %1523 = vmatprep.subr.mxu0 0.0
        %1524 = vmatpush1.msra.mxu0 %v1255
        %1525 = vmatprep.subr.mxu0 0.0
        %1526 = vmatpush1.msra.mxu0 %v1256
        %1527 = vmatprep.subr.mxu0 0.0
        %1528 = vmatpush1.msra.mxu0 %v1257
        %1529 = vmatprep.subr.mxu0 0.0
        %1530 = vmatpush1.msra.mxu0 %v1258
        %1531 = vmatprep.mubr.f32.mxu0 %v1125
        %1532 = vmatmul.mubr.f32.gmra.mrb[0].mxu0 %v1123
        %v1533 = vpop.f32.mrb[0].mxu0
        %v1534 = vadd.f32 %v1454, %v1533
        %v1535 = vpop.f32.mrb[0].mxu0
        %1536 = vmatprep.mubr.f32.mxu0 %v1126
        %1537 = vmatmul.mubr.f32.gmra.mrb[0].mxu0 %v1124
        %v1538 = vpop.f32.mrb[0].mxu0
        %v1539 = vadd.f32 %v1459, %v1538
        %v1540 = vpop.f32.mrb[0].mxu0
        %1541 = vmatprep.mubr.f32.mxu0 %v1127
        %1542 = vmatmul.mubr.f32.gmra.mrb[0].mxu0 %v1125
        %v1543 = vpop.f32.mrb[0].mxu0
        %v1544 = vadd.f32 %v1464, %v1543
        %v1545 = vpop.f32.mrb[0].mxu0
        %1546 = vdwg.mxu0
        %1547 = vmatprep.subr.mxu0 0.0
        %1548 = vmatpush1.msra.mxu0 %v1259
        %1549 = vmatprep.subr.mxu0 0.0
        %1550 = vmatpush1.msra.mxu0 %v1260
        %1551 = vmatprep.subr.mxu0 0.0
        %1552 = vmatpush1.msra.mxu0 %v1261
        %1553 = vmatprep.subr.mxu0 0.0
        %1554 = vmatpush1.msra.mxu0 %v1262
        %1555 = vmatprep.subr.mxu0 0.0
        %1556 = vmatpush1.msra.mxu0 %v1263
        %1557 = vmatprep.subr.mxu0 0.0
        %1558 = vmatpush1.msra.mxu0 %v1264
        %1559 = vmatprep.subr.mxu0 0.0
        %1560 = vmatpush1.msra.mxu0 %v1265
        %1561 = vmatprep.subr.mxu0 0.0
        %1562 = vmatpush1.msra.mxu0 %v1266
        %1563 = vmatprep.subr.mxu0 0.0
        %1564 = vmatpush1.msra.mxu0 %v1267
        %1565 = vmatprep.subr.mxu0 0.0
        %1566 = vmatpush1.msra.mxu0 %v1268
        %1567 = vmatprep.subr.mxu0 0.0
        %1568 = vmatpush1.msra.mxu0 %v1269
        %1569 = vmatprep.subr.mxu0 0.0
        %1570 = vmatpush1.msra.mxu0 %v1270
        %1571 = vmatprep.subr.mxu0 0.0
        %1572 = vmatpush1.msra.mxu0 %v1271
        %1573 = vmatprep.subr.mxu0 0.0
        %1574 = vmatpush1.msra.mxu0 %v1272
        %1575 = vmatprep.subr.mxu0 0.0
        %1576 = vmatpush1.msra.mxu0 %v1273
        %1577 = vmatprep.subr.mxu0 0.0
        %1578 = vmatpush1.msra.mxu0 %v1274
        %1579 = vmatprep.subr.mxu0 0.0
        %1580 = vmatpush1.msra.mxu0 %v1275
        %1581 = vmatprep.subr.mxu0 0.0
        %1582 = vmatpush1.msra.mxu0 %v1276
        %1583 = vmatprep.subr.mxu0 0.0
        %1584 = vmatpush1.msra.mxu0 %v1277
        %1585 = vmatprep.subr.mxu0 0.0
        %1586 = vmatpush1.msra.mxu0 %v1278
        %1587 = vmatprep.subr.mxu0 0.0
        %1588 = vmatpush1.msra.mxu0 %v1279
        %1589 = vmatprep.subr.mxu0 0.0
        %1590 = vmatpush1.msra.mxu0 %v1280
        %1591 = vmatprep.subr.mxu0 0.0
        %1592 = vmatpush1.msra.mxu0 %v1281
        %1593 = vmatprep.subr.mxu0 0.0
        %1594 = vmatpush1.msra.mxu0 %v1282
        %1595 = vmatprep.subr.mxu0 0.0
        %1596 = vmatpush1.msra.mxu0 %v1283
        %1597 = vmatprep.subr.mxu0 0.0
        %1598 = vmatpush1.msra.mxu0 %v1284
        %1599 = vmatprep.subr.mxu0 0.0
        %1600 = vmatpush1.msra.mxu0 %v1285
        %1601 = vmatprep.subr.mxu0 0.0
        %1602 = vmatpush1.msra.mxu0 %v1286
        %1603 = vmatprep.subr.mxu0 0.0
        %1604 = vmatpush1.msra.mxu0 %v1287
        %1605 = vmatprep.subr.mxu0 0.0
        %1606 = vmatpush1.msra.mxu0 %v1288
        %1607 = vmatprep.subr.mxu0 0.0
        %1608 = vmatpush1.msra.mxu0 %v1289
        %1609 = vmatprep.subr.mxu0 0.0
        %1610 = vmatpush1.msra.mxu0 %v1290
        %1611 = vmatprep.mubr.f32.mxu0 %v1130
        %1612 = vmatmul.mubr.f32.gmra.mrb[0].mxu0 %v1128
        %v1613 = vpop.f32.mrb[0].mxu0
        %v1614 = vadd.f32 %v1534, %v1613
        %v1615 = vpop.f32.mrb[0].mxu0
        %1616 = vmatprep.mubr.f32.mxu0 %v1131
        %1617 = vmatmul.mubr.f32.gmra.mrb[0].mxu0 %v1129
        %v1618 = vpop.f32.mrb[0].mxu0
        %v1619 = vadd.f32 %v1539, %v1618
        %v1620 = vpop.f32.mrb[0].mxu0
        %1621 = vmatprep.mubr.f32.mxu0 %v1132
        %1622 = vmatmul.mubr.f32.gmra.mrb[0].mxu0 %v1130
        %v1623 = vpop.f32.mrb[0].mxu0
        %v1624 = vadd.f32 %v1544, %v1623
        %v1625 = vpop.f32.mrb[0].mxu0
        %1626 = vdwg.mxu0
        %1627 = vmatprep.subr.mxu0 0.0
        %1628 = vmatpush1.msra.mxu0 %v1291
        %1629 = vmatprep.subr.mxu0 0.0
        %1630 = vmatpush1.msra.mxu0 %v1292
        %1631 = vmatprep.subr.mxu0 0.0
        %1632 = vmatpush1.msra.mxu0 %v1293
        %1633 = vmatprep.subr.mxu0 0.0
        %1634 = vmatpush1.msra.mxu0 %v1294
        %1635 = vmatprep.subr.mxu0 0.0
        %1636 = vmatpush1.msra.mxu0 %v1295
        %1637 = vmatprep.subr.mxu0 0.0
        %1638 = vmatpush1.msra.mxu0 %v1296
        %1639 = vmatprep.subr.mxu0 0.0
        %1640 = vmatpush1.msra.mxu0 %v1297
        %1641 = vmatprep.subr.mxu0 0.0
        %1642 = vmatpush1.msra.mxu0 %v1298
        %1643 = vmatprep.subr.mxu0 0.0
        %1644 = vmatpush1.msra.mxu0 %v1299
        %1645 = vmatprep.subr.mxu0 0.0
        %1646 = vmatpush1.msra.mxu0 %v1300
        %1647 = vmatprep.subr.mxu0 0.0
        %1648 = vmatpush1.msra.mxu0 %v1301
        %1649 = vmatprep.subr.mxu0 0.0
        %1650 = vmatpush1.msra.mxu0 %v1302
        %1651 = vmatprep.subr.mxu0 0.0
        %1652 = vmatpush1.msra.mxu0 %v1303
        %1653 = vmatprep.subr.mxu0 0.0
        %1654 = vmatpush1.msra.mxu0 %v1304
        %1655 = vmatprep.subr.mxu0 0.0
        %1656 = vmatpush1.msra.mxu0 %v1305
        %1657 = vmatprep.subr.mxu0 0.0
        %1658 = vmatpush1.msra.mxu0 %v1306
        %1659 = vmatprep.subr.mxu0 0.0
        %1660 = vmatpush1.msra.mxu0 0.0
        %1661 = vmatprep.subr.mxu0 0.0
        %1662 = vmatpush1.msra.mxu0 0.0
        %1663 = vmatprep.subr.mxu0 0.0
        %1664 = vmatpush1.msra.mxu0 0.0
        %1665 = vmatprep.subr.mxu0 0.0
        %1666 = vmatpush1.msra.mxu0 0.0
        %1667 = vmatprep.subr.mxu0 0.0
        %1668 = vmatpush1.msra.mxu0 0.0
        %1669 = vmatprep.subr.mxu0 0.0
        %1670 = vmatpush1.msra.mxu0 0.0
        %1671 = vmatprep.subr.mxu0 0.0
        %1672 = vmatpush1.msra.mxu0 0.0
        %1673 = vmatprep.subr.mxu0 0.0
        %1674 = vmatpush1.msra.mxu0 0.0
        %1675 = vmatprep.subr.mxu0 0.0
        %1676 = vmatpush1.msra.mxu0 0.0
        %1677 = vmatprep.subr.mxu0 0.0
        %1678 = vmatpush1.msra.mxu0 0.0
        %1679 = vmatprep.subr.mxu0 0.0
        %1680 = vmatpush1.msra.mxu0 0.0
        %1681 = vmatprep.subr.mxu0 0.0
        %1682 = vmatpush1.msra.mxu0 0.0
        %1683 = vmatprep.subr.mxu0 0.0
        %1684 = vmatpush1.msra.mxu0 0.0
        %1685 = vmatprep.subr.mxu0 0.0
        %1686 = vmatpush1.msra.mxu0 0.0
        %1687 = vmatprep.subr.mxu0 0.0
        %1688 = vmatpush1.msra.mxu0 0.0
        %1689 = vmatprep.subr.mxu0 0.0
        %1690 = vmatpush1.msra.mxu0 0.0
        %1691 = vmatprep.mubr.f32.mxu0 0.0
        %1692 = vmatmul.mubr.f32.gmra.mrb[0].mxu0 %v1153
        %v1693 = vpop.f32.mrb[0].mxu0
        %v1694 = vadd.f32 %v1614, %v1693
        %v1695 = vpop.f32.mrb[0].mxu0
        %1696 = vmatprep.mubr.f32.mxu0 0.0
        %1697 = vmatmul.mubr.f32.gmra.mrb[0].mxu0 %v1156
        %v1698 = vpop.f32.mrb[0].mxu0
        %v1699 = vadd.f32 %v1619, %v1698
        %v1700 = vpop.f32.mrb[0].mxu0
        %1701 = vmatprep.mubr.f32.mxu0 0.0
        %1702 = vmatmul.mubr.f32.gmra.mrb[0].mxu0 %v1159
        %v1703 = vpop.f32.mrb[0].mxu0
        %v1704 = vadd.f32 %v1624, %v1703
        %v1705 = vpop.f32.mrb[0].mxu0
        %1706 = vdwg.mxu0
        %v1707 = vld [vmem:[%s5] sm:$0x1]
        %v1709 = vlaneseq
        %v1710 = vshrl.u32 %v1709, 7
        %v1711 = vsub.s32 0, %v1710
        %v1712 = vrot.slane %v1707, %v1711
        %v1714 = vmul.f32 %v1694, %v1712
        %v1715 = vmul.f32 %v1699, %v1712
        %v1716 = vmul.f32 %v1704, %v1712
        %v1717 = vld [vmem:[%s6] sm:$0x1]
        %v1719 = vlaneseq
        %v1720 = vshrl.u32 %v1719, 7
        %v1721 = vsub.s32 0, %v1720
        %v1722 = vrot.slane %v1717, %v1721
        %v1724 = vadd.f32 %v1714, %v1722
        %v1725 = vadd.f32 %v1715, %v1722
        %v1726 = vadd.f32 %v1716, %v1722
        %v1727 = vmax.f32 %v1724, 0.0
        %v1728 = vmax.f32 %v1725, 0.0
        %v1729 = vmax.f32 %v1726, 0.0
        %v1730 = vsel %vm313, %v1727, -inf
        %v1731 = vsel %vm313, %v1728, -inf
        %v1732 = vsel %vm313, %v1729, -inf
        %v1733 = vmax.f32 %v1730, %v1731
        %v1734 = vmax.f32 %v1733, %v1732
        %v1735 = vadd.f32 %v1734, 0.0
        %1736 = vst.msk [vmem:[%s271] sm:$0xff] %vm313, %v1735
        %s1737 = sand.u32 %s181, 1
        %s1738 = scalar_lea.sflag [#allocation3], %s1737
        %s1739 = sand.u32 %s181, 1
        %s1740 = smul.addr %s1739, 8
        %s1741 = scalar_lea.vmem [#allocation2], %s1740
        // Predicated region
        $region49: #{cnn_block_forward.1} parent=47 // pred_check
          %p1742 = pneg %p191
        $region50: #{cnn_block_forward.1} parent=47 // pred_check_branch
          %1744 = sbr.rel (%p1742) target = $region52
        $region51: #{cnn_block_forward.1} parent=47 // pred_region
          %s1746 = ssub.s32 128, 128
          %1747 = vsyncadd %s1738, %s1746
          %s1748 = smul.addr %s21, 128
          %s1749 = scalar_lea.hbm %s7, %s1748
          %s1751 = sshll.u32 %s1741, 4
          %s1752 = int_to_ptr.vmem [resolvable:$true] %s1751
          %1754 = dma.vmem_to_hbm [thread:$0]  %s1752, 128, %s1749, %s1738
        $region52: #{cnn_block_forward.1} parent=47 // pred_fallthru
          _
      $region48: #{cnn_block_forward.1} parent=5 // pred_fallthru
        _
      %p1755 = scmp.le.s32.totalorder 2, %s16
      // Predicated region
      $region53: #{cnn_block_forward.1} parent=5 // pred_check
        %p1756 = pneg %p1755
      $region54: #{cnn_block_forward.1} parent=5 // pred_check_branch
        %1758 = sbr.rel (%p1756) target = $region56
      $region55: #{cnn_block_forward.1} parent=5 // pred_region
        %s1759 = ssub.s32 %s16, 2
        // Predicated region
        $region57: #{cnn_block_forward.1} parent=55 // pred_check
          %p1760 = pneg %p197
        $region58: #{cnn_block_forward.1} parent=55 // pred_check_branch
          %1762 = sbr.rel (%p1760) target = $region60
        $region59: #{cnn_block_forward.1} parent=55 // pred_region
          %s1763 = sand.u32 %s182, 1
          %s1764 = scalar_lea.sflag [#allocation3], %s1763
          %s1765 = sand.u32 %s182, 1
          %s1766 = smul.addr %s1765, 8
          %s1767 = scalar_lea.vmem [#allocation2], %s1766
          %1768 = dma.done %s1764, 128
        $region60: #{cnn_block_forward.1} parent=55 // pred_fallthru
          _
      $region56: #{cnn_block_forward.1} parent=5 // pred_fallthru
        _
    $region6: #{cnn_block_forward.1} parent=1 // loop_footer
      %s20 = sadd.s32 1, %s16
    $region7: #{cnn_block_forward.1} parent=1 // loop_footer_branch
      %15 = sbr.rel target = $region3
    $region8: #{cnn_block_forward.1} parent=1 // loop_exit
      _
    %1769 = vsyncpa [#allocation3], 1
    %s1770 = scalar_lea.sflag [#allocation3], 1
    %1771 = vsyncpa %s1770, 1

</llo_original>
